<compile_context>
chip_gen: v7x
topology: tpu7x:2x2x1
jax: 0.10.0
libtpu: 0.0.40
codegen_flags: <defaults>
</compile_context>

<pallas_src>
import functools

import jax
import jax.numpy as jnp
from jax.experimental import pallas as pl
from jax.experimental.pallas import tpu as pltpu

_L_IN = 432        # sequence length required so that view(-1, 64) keeps the batch dim
_C_IN = 5
_T1 = _L_IN // 3   # 144 conv1 output positions
_K1 = 16           # conv1 im2col features 5*3 = 15, padded to 16 lanes
_C_MID = 32
_N_CLASSES = 2
_TB_MAX = 256      # max batch rows per grid step


# ------------------------------ Pallas kernel ------------------------------ #

def _fused_forward_kernel(x_ref, w1_ref, b1_ref, w2_ref, b2_ref,
                          w3_ref, b3_ref, fcw_ref, fcb_ref, o_ref):
    """Whole forward for one batch tile. Intermediates stay in VMEM.

    x_ref  : (144, TB, 16)  im2col'd conv1 input [time, batch, cin*k], compute dtype
    w1_ref : (16, 32)       conv1 weight with taps folded into K
    w2_ref : (3, 32, 32)    conv2 weight split per tap k (w3_ref likewise)
    b*_ref : (1, Cout) f32
    fcw_ref: (2, 32, 2)     fc weight with the view(-1,64) permutation folded in
    fcb_ref: (1, 2) f32
    o_ref  : (TB, 2) f32    softmax probabilities
    """
    tb = x_ref.shape[1]
    cdt = x_ref.dtype

    # conv1: taps already folded into K=16 -> a single MXU dot, then
    # bias + ReLU + MaxPool1d(2) as an adjacent-row max (leading-dim only).
    acc = jnp.dot(x_ref[...].reshape(_T1 * tb, _K1), w1_ref[...],
                  preferred_element_type=jnp.float32)            # (144*TB, 32)
    y = jnp.maximum(acc + b1_ref[...], 0.0)
    y = y.reshape(_T1 // 2, 2, tb, _C_MID)                       # MaxPool1d(2)
    h = jnp.maximum(y[:, 0], y[:, 1]).astype(cdt)                # (72, TB, 32)

    def conv_relu_pool(h, w_ref, b_ref):
        # h: (T, TB, 32), T % 6 == 0  ->  (T//6, TB, 32)
        t_conv = h.shape[0] // 3
        rows = t_conv * tb
        hk = h.reshape(t_conv, 3, tb, _C_MID)                    # leading-dim split
        acc = jnp.dot(hk[:, 0].reshape(rows, _C_MID), w_ref[0],
                      preferred_element_type=jnp.float32)
        for k in (1, 2):                                         # stride-3 conv = 3 taps
            acc = acc + jnp.dot(hk[:, k].reshape(rows, _C_MID), w_ref[k],
                                preferred_element_type=jnp.float32)
        y = jnp.maximum(acc + b_ref[...], 0.0)                   # bias + ReLU
        y = y.reshape(t_conv // 2, 2, tb, _C_MID)                # MaxPool1d(2)
        return jnp.maximum(y[:, 0], y[:, 1]).astype(cdt)

    h = conv_relu_pool(h, w2_ref, b2_ref)                        # (12, TB, 32)
    h = conv_relu_pool(h, w3_ref, b3_ref)                        # (2,  TB, 32)

    # Linear(64, 2): feature index f = c*2 + t already folded into fcw_ref[t].
    logits = (jnp.dot(h[0], fcw_ref[0], preferred_element_type=jnp.float32)
              + jnp.dot(h[1], fcw_ref[1], preferred_element_type=jnp.float32)
              + fcb_ref[...])                                    # (TB, 2), f32
    m = jnp.max(logits, axis=-1, keepdims=True)
    e = jnp.exp(logits - m)
    o_ref[...] = e / jnp.sum(e, axis=-1, keepdims=True)


# ------------------------------- JAX wrapper -------------------------------- #

def _round_up(x, m):
    return (x + m - 1) // m * m


def _choose_tiling(n):
    """Batch tile (multiple of 8, <= _TB_MAX). When more than one grid step is
    needed, round the step count UP to an even number so v7x's 2 TensorCores
    get balanced work (v5e/v6e: at most one extra padded tile)."""
    if n <= _TB_MAX:
        tb = _round_up(max(n, 1), 8)
        return tb, tb
    steps = -(-n // _TB_MAX)
    if steps % 2:
        steps += 1
    tb = _round_up(-(-n // steps), 8)
    return tb, steps * tb


@functools.partial(jax.jit, static_argnames=("compute_dtype",))
def apnea_resnet_forward(x, params, compute_dtype=jnp.float32):
    """x: (N, 5, 432) float32 (PyTorch NCW). Returns (N, 2) f32 softmax probs."""
    w1, b1, w2, b2, w3, b3, fcw, fcb = params
    n = x.shape[0]
    assert x.shape[1] == _C_IN and x.shape[2] == _L_IN, x.shape

    tb, n_pad = _choose_tiling(n)

    # im2col for conv1 (stride == kernel == 3 -> non-overlapping windows):
    # (N,5,432) -> (144, N, 15) time-major [t, n, i*3+k]; pad batch to the tile
    # and 15 -> 16 lanes. Cast to the compute dtype BEFORE the relayout so the
    # wrapper-side HBM pass is done at the narrow width.
    # TODO(synk): for repeated inference, pre-compute this layout once outside
    # the jit'd call to avoid the extra HBM round trip per call.
    xt = jnp.transpose(x.astype(compute_dtype).reshape(n, _C_IN, _T1, 3),
                       (2, 0, 1, 3)).reshape(_T1, n, _C_IN * 3)
    xt = jnp.pad(xt, ((0, 0), (0, n_pad - n), (0, _K1 - _C_IN * 3)))

    # conv1 weight (32,5,3) -> (15,32) rows ordered f = i*3 + k, padded to 16.
    w1f = jnp.pad(jnp.transpose(w1, (1, 2, 0)).reshape(_C_IN * 3, _C_MID),
                  ((0, _K1 - _C_IN * 3), (0, 0))).astype(compute_dtype)
    # conv2/3 weights (Cout, Cin, K) -> per-tap (K, Cin, Cout).
    w2k = jnp.transpose(w2, (2, 1, 0)).astype(compute_dtype)     # (3, 32, 32)
    w3k = jnp.transpose(w3, (2, 1, 0)).astype(compute_dtype)     # (3, 32, 32)
    # PyTorch view(-1,64) of (N,32,2) uses f = c*2 + t; our activation is [t,n,c].
    fcw_t = jnp.transpose(fcw.reshape(_N_CLASSES, _C_MID, 2),
                          (2, 1, 0)).astype(compute_dtype)       # (2, 32, 2)

    f32 = jnp.float32
    grid = (n_pad // tb,)
    in_specs = [
        pl.BlockSpec((_T1, tb, _K1), lambda i: (0, i, 0)),
        pl.BlockSpec((_K1, _C_MID), lambda i: (0, 0)),
        pl.BlockSpec((1, _C_MID), lambda i: (0, 0)),
        pl.BlockSpec((3, _C_MID, _C_MID), lambda i: (0, 0, 0)),
        pl.BlockSpec((1, _C_MID), lambda i: (0, 0)),
        pl.BlockSpec((3, _C_MID, _C_MID), lambda i: (0, 0, 0)),
        pl.BlockSpec((1, _C_MID), lambda i: (0, 0)),
        pl.BlockSpec((2, _C_MID, _N_CLASSES), lambda i: (0, 0, 0)),
        pl.BlockSpec((1, _N_CLASSES), lambda i: (0, 0)),
    ]
    out_specs = pl.BlockSpec((tb, _N_CLASSES), lambda i: (i, 0))

    flops = n_pad * (2 * _T1 * _K1 * _C_MID            # conv1 (taps folded into K)
                     + 2 * 24 * 3 * _C_MID * _C_MID    # conv2
                     + 2 * 4 * 3 * _C_MID * _C_MID     # conv3
                     + 2 * 64 * _N_CLASSES)            # fc
    itemsize = jnp.dtype(compute_dtype).itemsize
    bytes_accessed = (itemsize * (xt.size + w1f.size + w2k.size + w3k.size
                                  + fcw_t.size)
                      + 4 * (3 * _C_MID + _N_CLASSES + n_pad * _N_CLASSES))

    out = pl.pallas_call(
        _fused_forward_kernel,
        out_shape=jax.ShapeDtypeStruct((n_pad, _N_CLASSES), jnp.float32),
        grid=grid,
        in_specs=in_specs,
        out_specs=out_specs,
        compiler_params=pltpu.CompilerParams(
            dimension_semantics=("parallel",),
            vmem_limit_bytes=48 * 1024 * 1024),
        cost_estimate=pl.CostEstimate(
            flops=flops, transcendentals=2 * n_pad,
            bytes_accessed=bytes_accessed),
    )(xt, w1f, b1.reshape(1, -1).astype(f32),
      w2k, b2.reshape(1, -1).astype(f32),
      w3k, b3.reshape(1, -1).astype(f32),
      fcw_t, fcb.reshape(1, -1).astype(f32))
    return out[:n]


# --------------------------- pure-JAX reference ----------------------------- #

@jax.jit
def reference_forward(x, params):
    w1, b1, w2, b2, w3, b3, fcw, fcb = params

    def conv_relu_pool(h, w, b):
        y = jax.lax.conv_general_dilated(
            h, w, window_strides=(3,), padding='VALID',
            dimension_numbers=('NCH', 'OIH', 'NCH'))
        y = jnp.maximum(y + b[None, :, None], 0.0)
        n, c, l = y.shape
        return y[:, :, :(l // 2) * 2].reshape(n, c, l // 2, 2).max(axis=-1)

    h = conv_relu_pool(x, w1, b1)
    h = conv_relu_pool(h, w2, b2)
    h = conv_relu_pool(h, w3, b3)
    feat = h.reshape(-1, 64)
    logits = feat @ fcw.T + fcb
    return jax.nn.softmax(logits, axis=1)


# ----------------------------------- main ------------------------------------ #

if __name__ == "__main__":
    key = jax.random.PRNGKey(0)
    ks = jax.random.split(key, 10)

    params = (
        jax.random.normal(ks[0], (32, 5, 3), jnp.float32) * 0.2,   # conv1.w
        jax.random.normal(ks[1], (32,), jnp.float32) * 0.1,        # conv1.b
        jax.random.normal(ks[2], (32, 32, 3), jnp.float32) * 0.1,  # conv2.w
        jax.random.normal(ks[3], (32,), jnp.float32) * 0.1,        # conv2.b
        jax.random.normal(ks[4], (32, 32, 3), jnp.float32) * 0.1,  # conv3.w
        jax.random.normal(ks[5], (32,), jnp.float32) * 0.1,        # conv3.b
        jax.random.normal(ks[6], (2, 64), jnp.float32) * 0.2,      # fc.w
        jax.random.normal(ks[7], (2,), jnp.float32) * 0.1,         # fc.b
    )

    # Small batch (single grid step): 432 -> 144 -> 72 -> 24 -> 12 -> 4 -> 2.
    x = jax.random.normal(ks[8], (2, 5, 432), jnp.float32)
    out = jax.block_until_ready(apnea_resnet_forward(x, params))
    ref = jax.block_until_ready(reference_forward(x, params))
    assert out.shape == (2, 2), out.shape
    assert jnp.allclose(out, ref, rtol=1e-4, atol=1e-5), (out, ref)
    assert jnp.allclose(out.sum(axis=1), 1.0, atol=1e-5)

    # Larger batch: exercises the multi-step grid (2 balanced steps of 152 rows)
    # and the batch padding path.
    xb = jax.random.normal(ks[9], (300, 5, 432), jnp.float32)
    outb = jax.block_until_ready(apnea_resnet_forward(xb, params))
    refb = jax.block_until_ready(reference_forward(xb, params))
    assert outb.shape == (300, 2), outb.shape
    assert jnp.allclose(outb, refb, rtol=1e-4, atol=1e-5)

    # Optional reduced-precision path (bf16 activations/weights, f32 accumulate
    # and softmax) — halves input HBM traffic; validated at a loose tolerance.
    outb16 = jax.block_until_ready(
        apnea_resnet_forward(xb, params, compute_dtype=jnp.bfloat16))
    assert outb16.shape == (300, 2), outb16.shape
    assert jnp.allclose(outb16, refb, atol=5e-2), float(jnp.abs(outb16 - refb).max())

    print("KERNEL_OK")
</pallas_src>

<mosaic_0001>
module attributes {stable_mosaic.version = 11 : i64} {
  func.func @_fused_forward_kernel(%arg0: i32, %arg1: memref<144x8x16xf32, #tpu.memory_space<vmem>>, %arg2: memref<16x32xf32, #tpu.memory_space<vmem>>, %arg3: memref<1x32xf32, #tpu.memory_space<vmem>>, %arg4: memref<3x32x32xf32, #tpu.memory_space<vmem>>, %arg5: memref<1x32xf32, #tpu.memory_space<vmem>>, %arg6: memref<3x32x32xf32, #tpu.memory_space<vmem>>, %arg7: memref<1x32xf32, #tpu.memory_space<vmem>>, %arg8: memref<2x32x2xf32, #tpu.memory_space<vmem>>, %arg9: memref<1x2xf32, #tpu.memory_space<vmem>>, %arg10: memref<8x2xf32, #tpu.memory_space<vmem>>) attributes {dimension_semantics = [#tpu.dimension_semantics<parallel>], iteration_bounds = array<i64: 1>, scalar_prefetch = 0 : i64, scratch_operands = 0 : i64, tpu.core_type = #tpu.core_type<tc>, window_params = [{transform_indices = @transform_0, window_bounds = array<i64: 144, 8, 16>}, {pipeline_mode = #tpu.pipeline_mode<synchronous>, transform_indices = @transform_1, window_bounds = array<i64: 16, 32>}, {pipeline_mode = #tpu.pipeline_mode<synchronous>, transform_indices = @transform_2, window_bounds = array<i64: 1, 32>}, {pipeline_mode = #tpu.pipeline_mode<synchronous>, transform_indices = @transform_3, window_bounds = array<i64: 3, 32, 32>}, {pipeline_mode = #tpu.pipeline_mode<synchronous>, transform_indices = @transform_4, window_bounds = array<i64: 1, 32>}, {pipeline_mode = #tpu.pipeline_mode<synchronous>, transform_indices = @transform_5, window_bounds = array<i64: 3, 32, 32>}, {pipeline_mode = #tpu.pipeline_mode<synchronous>, transform_indices = @transform_6, window_bounds = array<i64: 1, 32>}, {pipeline_mode = #tpu.pipeline_mode<synchronous>, transform_indices = @transform_7, window_bounds = array<i64: 2, 32, 2>}, {pipeline_mode = #tpu.pipeline_mode<synchronous>, transform_indices = @transform_8, window_bounds = array<i64: 1, 2>}, {transform_indices = @transform_9, window_bounds = array<i64: 8, 2>}]} {
    %c0 = arith.constant 0 : index
    %c0_0 = arith.constant 0 : index
    %c0_1 = arith.constant 0 : index
    %0 = vector.load %arg1[%c0, %c0_0, %c0_1] : memref<144x8x16xf32, #tpu.memory_space<vmem>>, vector<144x8x16xf32>
    %1 = vector.shape_cast %0 : vector<144x8x16xf32> to vector<1152x16xf32>
    %c0_2 = arith.constant 0 : index
    %c0_3 = arith.constant 0 : index
    %2 = vector.load %arg2[%c0_2, %c0_3] : memref<16x32xf32, #tpu.memory_space<vmem>>, vector<16x32xf32>
    %cst = arith.constant dense<0.000000e+00> : vector<1152x32xf32>
    %3 = tpu.matmul %1, %2, %cst {dimension_numbers = #tpu.dot_dimension_numbers<[1], [0], [0], [1], [0, 0, 1, 1], [], []>} : vector<1152x16xf32>, vector<16x32xf32>, vector<1152x32xf32> -> vector<1152x32xf32>
    %c0_4 = arith.constant 0 : index
    %c0_5 = arith.constant 0 : index
    %4 = vector.load %arg3[%c0_4, %c0_5] : memref<1x32xf32, #tpu.memory_space<vmem>>, vector<1x32xf32>
    %5 = vector.broadcast %4 : vector<1x32xf32> to vector<1152x32xf32>
    %6 = arith.addf %3, %5 : vector<1152x32xf32>
    %cst_6 = arith.constant 0.000000e+00 : f32
    %7 = vector.broadcast %cst_6 : f32 to vector<1152x32xf32>
    %8 = arith.maximumf %6, %7 : vector<1152x32xf32>
    %9 = vector.shape_cast %8 : vector<1152x32xf32> to vector<72x2x8x32xf32>
    %10 = vector.extract_strided_slice %9 {offsets = [0, 0, 0, 0], sizes = [72, 1, 8, 32], strides = [1, 1, 1, 1]} : vector<72x2x8x32xf32> to vector<72x1x8x32xf32>
    %11 = vector.shape_cast %10 : vector<72x1x8x32xf32> to vector<72x8x32xf32>
    %12 = vector.extract_strided_slice %9 {offsets = [0, 1, 0, 0], sizes = [72, 1, 8, 32], strides = [1, 1, 1, 1]} : vector<72x2x8x32xf32> to vector<72x1x8x32xf32>
    %13 = vector.shape_cast %12 : vector<72x1x8x32xf32> to vector<72x8x32xf32>
    %14 = arith.maximumf %11, %13 : vector<72x8x32xf32>
    %15 = vector.shape_cast %14 : vector<72x8x32xf32> to vector<24x3x8x32xf32>
    %16 = vector.extract_strided_slice %15 {offsets = [0, 0, 0, 0], sizes = [24, 1, 8, 32], strides = [1, 1, 1, 1]} : vector<24x3x8x32xf32> to vector<24x1x8x32xf32>
    %17 = vector.shape_cast %16 : vector<24x1x8x32xf32> to vector<24x8x32xf32>
    %18 = vector.shape_cast %17 : vector<24x8x32xf32> to vector<192x32xf32>
    %c0_7 = arith.constant 0 : index
    %c0_8 = arith.constant 0 : index
    %c0_9 = arith.constant 0 : index
    %19 = vector.load %arg4[%c0_7, %c0_8, %c0_9] : memref<3x32x32xf32, #tpu.memory_space<vmem>>, vector<1x32x32xf32>
    %20 = vector.shape_cast %19 : vector<1x32x32xf32> to vector<32x32xf32>
    %cst_10 = arith.constant dense<0.000000e+00> : vector<192x32xf32>
    %21 = tpu.matmul %18, %20, %cst_10 {dimension_numbers = #tpu.dot_dimension_numbers<[1], [0], [0], [1], [0, 0, 1, 1], [], []>} : vector<192x32xf32>, vector<32x32xf32>, vector<192x32xf32> -> vector<192x32xf32>
    %22 = vector.extract_strided_slice %15 {offsets = [0, 1, 0, 0], sizes = [24, 1, 8, 32], strides = [1, 1, 1, 1]} : vector<24x3x8x32xf32> to vector<24x1x8x32xf32>
    %23 = vector.shape_cast %22 : vector<24x1x8x32xf32> to vector<24x8x32xf32>
    %24 = vector.shape_cast %23 : vector<24x8x32xf32> to vector<192x32xf32>
    %c1 = arith.constant 1 : index
    %c0_11 = arith.constant 0 : index
    %c0_12 = arith.constant 0 : index
    %25 = vector.load %arg4[%c1, %c0_11, %c0_12] : memref<3x32x32xf32, #tpu.memory_space<vmem>>, vector<1x32x32xf32>
    %26 = vector.shape_cast %25 : vector<1x32x32xf32> to vector<32x32xf32>
    %cst_13 = arith.constant dense<0.000000e+00> : vector<192x32xf32>
    %27 = tpu.matmul %24, %26, %cst_13 {dimension_numbers = #tpu.dot_dimension_numbers<[1], [0], [0], [1], [0, 0, 1, 1], [], []>} : vector<192x32xf32>, vector<32x32xf32>, vector<192x32xf32> -> vector<192x32xf32>
    %28 = arith.addf %21, %27 : vector<192x32xf32>
    %29 = vector.extract_strided_slice %15 {offsets = [0, 2, 0, 0], sizes = [24, 1, 8, 32], strides = [1, 1, 1, 1]} : vector<24x3x8x32xf32> to vector<24x1x8x32xf32>
    %30 = vector.shape_cast %29 : vector<24x1x8x32xf32> to vector<24x8x32xf32>
    %31 = vector.shape_cast %30 : vector<24x8x32xf32> to vector<192x32xf32>
    %c2 = arith.constant 2 : index
    %c0_14 = arith.constant 0 : index
    %c0_15 = arith.constant 0 : index
    %32 = vector.load %arg4[%c2, %c0_14, %c0_15] : memref<3x32x32xf32, #tpu.memory_space<vmem>>, vector<1x32x32xf32>
    %33 = vector.shape_cast %32 : vector<1x32x32xf32> to vector<32x32xf32>
    %cst_16 = arith.constant dense<0.000000e+00> : vector<192x32xf32>
    %34 = tpu.matmul %31, %33, %cst_16 {dimension_numbers = #tpu.dot_dimension_numbers<[1], [0], [0], [1], [0, 0, 1, 1], [], []>} : vector<192x32xf32>, vector<32x32xf32>, vector<192x32xf32> -> vector<192x32xf32>
    %35 = arith.addf %28, %34 : vector<192x32xf32>
    %c0_17 = arith.constant 0 : index
    %c0_18 = arith.constant 0 : index
    %36 = vector.load %arg5[%c0_17, %c0_18] : memref<1x32xf32, #tpu.memory_space<vmem>>, vector<1x32xf32>
    %37 = vector.broadcast %36 : vector<1x32xf32> to vector<192x32xf32>
    %38 = arith.addf %35, %37 : vector<192x32xf32>
    %cst_19 = arith.constant 0.000000e+00 : f32
    %39 = vector.broadcast %cst_19 : f32 to vector<192x32xf32>
    %40 = arith.maximumf %38, %39 : vector<192x32xf32>
    %41 = vector.shape_cast %40 : vector<192x32xf32> to vector<12x2x8x32xf32>
    %42 = vector.extract_strided_slice %41 {offsets = [0, 0, 0, 0], sizes = [12, 1, 8, 32], strides = [1, 1, 1, 1]} : vector<12x2x8x32xf32> to vector<12x1x8x32xf32>
    %43 = vector.shape_cast %42 : vector<12x1x8x32xf32> to vector<12x8x32xf32>
    %44 = vector.extract_strided_slice %41 {offsets = [0, 1, 0, 0], sizes = [12, 1, 8, 32], strides = [1, 1, 1, 1]} : vector<12x2x8x32xf32> to vector<12x1x8x32xf32>
    %45 = vector.shape_cast %44 : vector<12x1x8x32xf32> to vector<12x8x32xf32>
    %46 = arith.maximumf %43, %45 : vector<12x8x32xf32>
    %47 = vector.shape_cast %46 : vector<12x8x32xf32> to vector<4x3x8x32xf32>
    %48 = vector.extract_strided_slice %47 {offsets = [0, 0, 0, 0], sizes = [4, 1, 8, 32], strides = [1, 1, 1, 1]} : vector<4x3x8x32xf32> to vector<4x1x8x32xf32>
    %49 = vector.shape_cast %48 : vector<4x1x8x32xf32> to vector<4x8x32xf32>
    %50 = vector.shape_cast %49 : vector<4x8x32xf32> to vector<32x32xf32>
    %c0_20 = arith.constant 0 : index
    %c0_21 = arith.constant 0 : index
    %c0_22 = arith.constant 0 : index
    %51 = vector.load %arg6[%c0_20, %c0_21, %c0_22] : memref<3x32x32xf32, #tpu.memory_space<vmem>>, vector<1x32x32xf32>
    %52 = vector.shape_cast %51 : vector<1x32x32xf32> to vector<32x32xf32>
    %cst_23 = arith.constant dense<0.000000e+00> : vector<32x32xf32>
    %53 = tpu.matmul %50, %52, %cst_23 {dimension_numbers = #tpu.dot_dimension_numbers<[1], [0], [0], [1], [0, 0, 1, 1], [], []>} : vector<32x32xf32>, vector<32x32xf32>, vector<32x32xf32> -> vector<32x32xf32>
    %54 = vector.extract_strided_slice %47 {offsets = [0, 1, 0, 0], sizes = [4, 1, 8, 32], strides = [1, 1, 1, 1]} : vector<4x3x8x32xf32> to vector<4x1x8x32xf32>
    %55 = vector.shape_cast %54 : vector<4x1x8x32xf32> to vector<4x8x32xf32>
    %56 = vector.shape_cast %55 : vector<4x8x32xf32> to vector<32x32xf32>
    %c1_24 = arith.constant 1 : index
    %c0_25 = arith.constant 0 : index
    %c0_26 = arith.constant 0 : index
    %57 = vector.load %arg6[%c1_24, %c0_25, %c0_26] : memref<3x32x32xf32, #tpu.memory_space<vmem>>, vector<1x32x32xf32>
    %58 = vector.shape_cast %57 : vector<1x32x32xf32> to vector<32x32xf32>
    %cst_27 = arith.constant dense<0.000000e+00> : vector<32x32xf32>
    %59 = tpu.matmul %56, %58, %cst_27 {dimension_numbers = #tpu.dot_dimension_numbers<[1], [0], [0], [1], [0, 0, 1, 1], [], []>} : vector<32x32xf32>, vector<32x32xf32>, vector<32x32xf32> -> vector<32x32xf32>
    %60 = arith.addf %53, %59 : vector<32x32xf32>
    %61 = vector.extract_strided_slice %47 {offsets = [0, 2, 0, 0], sizes = [4, 1, 8, 32], strides = [1, 1, 1, 1]} : vector<4x3x8x32xf32> to vector<4x1x8x32xf32>
    %62 = vector.shape_cast %61 : vector<4x1x8x32xf32> to vector<4x8x32xf32>
    %63 = vector.shape_cast %62 : vector<4x8x32xf32> to vector<32x32xf32>
    %c2_28 = arith.constant 2 : index
    %c0_29 = arith.constant 0 : index
    %c0_30 = arith.constant 0 : index
    %64 = vector.load %arg6[%c2_28, %c0_29, %c0_30] : memref<3x32x32xf32, #tpu.memory_space<vmem>>, vector<1x32x32xf32>
    %65 = vector.shape_cast %64 : vector<1x32x32xf32> to vector<32x32xf32>
    %cst_31 = arith.constant dense<0.000000e+00> : vector<32x32xf32>
    %66 = tpu.matmul %63, %65, %cst_31 {dimension_numbers = #tpu.dot_dimension_numbers<[1], [0], [0], [1], [0, 0, 1, 1], [], []>} : vector<32x32xf32>, vector<32x32xf32>, vector<32x32xf32> -> vector<32x32xf32>
    %67 = arith.addf %60, %66 : vector<32x32xf32>
    %c0_32 = arith.constant 0 : index
    %c0_33 = arith.constant 0 : index
    %68 = vector.load %arg7[%c0_32, %c0_33] : memref<1x32xf32, #tpu.memory_space<vmem>>, vector<1x32xf32>
    %69 = vector.broadcast %68 : vector<1x32xf32> to vector<32x32xf32>
    %70 = arith.addf %67, %69 : vector<32x32xf32>
    %cst_34 = arith.constant 0.000000e+00 : f32
    %71 = vector.broadcast %cst_34 : f32 to vector<32x32xf32>
    %72 = arith.maximumf %70, %71 : vector<32x32xf32>
    %73 = vector.shape_cast %72 : vector<32x32xf32> to vector<2x2x8x32xf32>
    %74 = vector.extract_strided_slice %73 {offsets = [0, 0, 0, 0], sizes = [2, 1, 8, 32], strides = [1, 1, 1, 1]} : vector<2x2x8x32xf32> to vector<2x1x8x32xf32>
    %75 = vector.shape_cast %74 : vector<2x1x8x32xf32> to vector<2x8x32xf32>
    %76 = vector.extract_strided_slice %73 {offsets = [0, 1, 0, 0], sizes = [2, 1, 8, 32], strides = [1, 1, 1, 1]} : vector<2x2x8x32xf32> to vector<2x1x8x32xf32>
    %77 = vector.shape_cast %76 : vector<2x1x8x32xf32> to vector<2x8x32xf32>
    %78 = arith.maximumf %75, %77 : vector<2x8x32xf32>
    %79 = vector.extract_strided_slice %78 {offsets = [0, 0, 0], sizes = [1, 8, 32], strides = [1, 1, 1]} : vector<2x8x32xf32> to vector<1x8x32xf32>
    %80 = vector.shape_cast %79 : vector<1x8x32xf32> to vector<8x32xf32>
    %c0_35 = arith.constant 0 : index
    %c0_36 = arith.constant 0 : index
    %c0_37 = arith.constant 0 : index
    %81 = vector.load %arg8[%c0_35, %c0_36, %c0_37] : memref<2x32x2xf32, #tpu.memory_space<vmem>>, vector<1x32x2xf32>
    %82 = vector.shape_cast %81 : vector<1x32x2xf32> to vector<32x2xf32>
    %cst_38 = arith.constant dense<0.000000e+00> : vector<8x2xf32>
    %83 = tpu.matmul %80, %82, %cst_38 {dimension_numbers = #tpu.dot_dimension_numbers<[1], [0], [0], [1], [0, 0, 1, 1], [], []>} : vector<8x32xf32>, vector<32x2xf32>, vector<8x2xf32> -> vector<8x2xf32>
    %84 = vector.extract_strided_slice %78 {offsets = [1, 0, 0], sizes = [1, 8, 32], strides = [1, 1, 1]} : vector<2x8x32xf32> to vector<1x8x32xf32>
    %85 = vector.shape_cast %84 : vector<1x8x32xf32> to vector<8x32xf32>
    %c1_39 = arith.constant 1 : index
    %c0_40 = arith.constant 0 : index
    %c0_41 = arith.constant 0 : index
    %86 = vector.load %arg8[%c1_39, %c0_40, %c0_41] : memref<2x32x2xf32, #tpu.memory_space<vmem>>, vector<1x32x2xf32>
    %87 = vector.shape_cast %86 : vector<1x32x2xf32> to vector<32x2xf32>
    %cst_42 = arith.constant dense<0.000000e+00> : vector<8x2xf32>
    %88 = tpu.matmul %85, %87, %cst_42 {dimension_numbers = #tpu.dot_dimension_numbers<[1], [0], [0], [1], [0, 0, 1, 1], [], []>} : vector<8x32xf32>, vector<32x2xf32>, vector<8x2xf32> -> vector<8x2xf32>
    %89 = arith.addf %83, %88 : vector<8x2xf32>
    %c0_43 = arith.constant 0 : index
    %c0_44 = arith.constant 0 : index
    %90 = vector.load %arg9[%c0_43, %c0_44] : memref<1x2xf32, #tpu.memory_space<vmem>>, vector<1x2xf32>
    %91 = vector.broadcast %90 : vector<1x2xf32> to vector<8x2xf32>
    %92 = arith.addf %89, %91 : vector<8x2xf32>
    %cst_45 = arith.constant dense<0xFF800000> : vector<8xf32>
    %93 = vector.multi_reduction <maximumf>, %92, %cst_45 [1] : vector<8x2xf32> to vector<8xf32>
    %94 = vector.shape_cast %93 : vector<8xf32> to vector<8x1xf32>
    %95 = vector.broadcast %94 : vector<8x1xf32> to vector<8x2xf32>
    %96 = arith.subf %92, %95 : vector<8x2xf32>
    %97 = math.exp %96 : vector<8x2xf32>
    %cst_46 = arith.constant dense<0.000000e+00> : vector<8xf32>
    %98 = vector.multi_reduction <add>, %97, %cst_46 [1] : vector<8x2xf32> to vector<8xf32>
    %99 = vector.shape_cast %98 : vector<8xf32> to vector<8x1xf32>
    %100 = vector.broadcast %99 : vector<8x1xf32> to vector<8x2xf32>
    %101 = arith.divf %97, %100 : vector<8x2xf32>
    %c0_47 = arith.constant 0 : index
    %c0_48 = arith.constant 0 : index
    %102 = vector.load %arg10[%c0_47, %c0_48] : memref<8x2xf32, #tpu.memory_space<vmem>>, vector<8x2xf32>
    tpu.vector_store %arg10[%c0_47, %c0_48], %101 {strides = array<i32>} : memref<8x2xf32, #tpu.memory_space<vmem>>, vector<8x2xf32>,
    return
  }
  func.func @transform_0(%arg0: i32) -> (i32, i32, i32) {
    %c0_i32 = arith.constant 0 : i32
    %c0_i32_0 = arith.constant 0 : i32
    %c0_i32_1 = arith.constant 0 : i32
    return %c0_i32, %arg0, %c0_i32_0 : i32, i32, i32
  }
  func.func @transform_1(%arg0: i32) -> (i32, i32) {
    %c0_i32 = arith.constant 0 : i32
    %c0_i32_0 = arith.constant 0 : i32
    %c0_i32_1 = arith.constant 0 : i32
    return %c0_i32, %c0_i32_0 : i32, i32
  }
  func.func @transform_2(%arg0: i32) -> (i32, i32) {
    %c0_i32 = arith.constant 0 : i32
    %c0_i32_0 = arith.constant 0 : i32
    %c0_i32_1 = arith.constant 0 : i32
    return %c0_i32, %c0_i32_0 : i32, i32
  }
  func.func @transform_3(%arg0: i32) -> (i32, i32, i32) {
    %c0_i32 = arith.constant 0 : i32
    %c0_i32_0 = arith.constant 0 : i32
    %c0_i32_1 = arith.constant 0 : i32
    %c0_i32_2 = arith.constant 0 : i32
    return %c0_i32, %c0_i32_0, %c0_i32_1 : i32, i32, i32
  }
  func.func @transform_4(%arg0: i32) -> (i32, i32) {
    %c0_i32 = arith.constant 0 : i32
    %c0_i32_0 = arith.constant 0 : i32
    %c0_i32_1 = arith.constant 0 : i32
    return %c0_i32, %c0_i32_0 : i32, i32
  }
  func.func @transform_5(%arg0: i32) -> (i32, i32, i32) {
    %c0_i32 = arith.constant 0 : i32
    %c0_i32_0 = arith.constant 0 : i32
    %c0_i32_1 = arith.constant 0 : i32
    %c0_i32_2 = arith.constant 0 : i32
    return %c0_i32, %c0_i32_0, %c0_i32_1 : i32, i32, i32
  }
  func.func @transform_6(%arg0: i32) -> (i32, i32) {
    %c0_i32 = arith.constant 0 : i32
    %c0_i32_0 = arith.constant 0 : i32
    %c0_i32_1 = arith.constant 0 : i32
    return %c0_i32, %c0_i32_0 : i32, i32
  }
  func.func @transform_7(%arg0: i32) -> (i32, i32, i32) {
    %c0_i32 = arith.constant 0 : i32
    %c0_i32_0 = arith.constant 0 : i32
    %c0_i32_1 = arith.constant 0 : i32
    %c0_i32_2 = arith.constant 0 : i32
    return %c0_i32, %c0_i32_0, %c0_i32_1 : i32, i32, i32
  }
  func.func @transform_8(%arg0: i32) -> (i32, i32) {
    %c0_i32 = arith.constant 0 : i32
    %c0_i32_0 = arith.constant 0 : i32
    %c0_i32_1 = arith.constant 0 : i32
    return %c0_i32, %c0_i32_0 : i32, i32
  }
  func.func @transform_9(%arg0: i32) -> (i32, i32) {
    %c0_i32 = arith.constant 0 : i32
    %c0_i32_0 = arith.constant 0 : i32
    return %arg0, %c0_i32 : i32, i32
  }
}

</mosaic_0001>

<llo_original>
// kernel: apnea_resnet_forward.1
$region0: #{apnea_resnet_forward.1}
  #allocation0 [shape = 'u32[]', space=smem, size = 0x4, offset = 0x4, fixed_abs, tag = 'smem constant byte address 0x4 - core index']
  #allocation1 [shape = 'u32[144,128]{1,0:T(1,128)}', space=vmem, size = 0x12000, scoped, tag = 'internal scratch']
  %s0 = inlined_call_operand.vmem [shape: f32[144,8,16], index: 0, kind: input, shape index: {}]
  %s1 = inlined_call_operand.vmem [shape: f32[16,32], index: 1, kind: input, shape index: {}]
  %s2 = inlined_call_operand.vmem [shape: f32[1,32], index: 2, kind: input, shape index: {}]
  %s3 = inlined_call_operand.vmem [shape: f32[3,32,32], index: 3, kind: input, shape index: {}]
  %s4 = inlined_call_operand.vmem [shape: f32[1,32], index: 4, kind: input, shape index: {}]
  %s5 = inlined_call_operand.vmem [shape: f32[3,32,32], index: 5, kind: input, shape index: {}]
  %s6 = inlined_call_operand.vmem [shape: f32[1,32], index: 6, kind: input, shape index: {}]
  %s7 = inlined_call_operand.vmem [shape: f32[2,32,2], index: 7, kind: input, shape index: {}]
  %s8 = inlined_call_operand.vmem [shape: f32[1,2], index: 8, kind: input, shape index: {}]
  %s9 = inlined_call_operand.vmem [shape: f32[8,2], index: 9, kind: output, shape index: {}]
  %s10 = sld [smem:[#allocation0]]
  $region46: #{apnea_resnet_forward.1} parent=0
    _
  %s12 = ssub.s32 1, %s10
  %s13 = scalar_select 0, %s12, %s10
  // Predicated region
  $region2: #{apnea_resnet_forward.1} parent=0 // pred_check
    _
  $region3: #{apnea_resnet_forward.1} parent=0 // pred_check_branch
    %15 = sbr.rel (0) target = $region5
  $region4: #{apnea_resnet_forward.1} parent=0 // pred_region
    _
  $region5: #{apnea_resnet_forward.1} parent=0 // pred_fallthru
    _
  // Predicated region
  $region6: #{apnea_resnet_forward.1} parent=0 // pred_check
    _
  $region7: #{apnea_resnet_forward.1} parent=0 // pred_check_branch
    %17 = sbr.rel (0) target = $region9
  $region8: #{apnea_resnet_forward.1} parent=0 // pred_region
    _
  $region9: #{apnea_resnet_forward.1} parent=0 // pred_fallthru
    _
  // Predicated region
  $region10: #{apnea_resnet_forward.1} parent=0 // pred_check
    _
  $region11: #{apnea_resnet_forward.1} parent=0 // pred_check_branch
    %19 = sbr.rel (0) target = $region13
  $region12: #{apnea_resnet_forward.1} parent=0 // pred_region
    _
  $region13: #{apnea_resnet_forward.1} parent=0 // pred_fallthru
    _
  // Predicated region
  $region14: #{apnea_resnet_forward.1} parent=0 // pred_check
    _
  $region15: #{apnea_resnet_forward.1} parent=0 // pred_check_branch
    %21 = sbr.rel (0) target = $region17
  $region16: #{apnea_resnet_forward.1} parent=0 // pred_region
    _
  $region17: #{apnea_resnet_forward.1} parent=0 // pred_fallthru
    _
  // Predicated region
  $region18: #{apnea_resnet_forward.1} parent=0 // pred_check
    _
  $region19: #{apnea_resnet_forward.1} parent=0 // pred_check_branch
    %23 = sbr.rel (0) target = $region21
  $region20: #{apnea_resnet_forward.1} parent=0 // pred_region
    _
  $region21: #{apnea_resnet_forward.1} parent=0 // pred_fallthru
    _
  // Predicated region
  $region22: #{apnea_resnet_forward.1} parent=0 // pred_check
    _
  $region23: #{apnea_resnet_forward.1} parent=0 // pred_check_branch
    %25 = sbr.rel (0) target = $region25
  $region24: #{apnea_resnet_forward.1} parent=0 // pred_region
    _
  $region25: #{apnea_resnet_forward.1} parent=0 // pred_fallthru
    _
  // Predicated region
  $region26: #{apnea_resnet_forward.1} parent=0 // pred_check
    _
  $region27: #{apnea_resnet_forward.1} parent=0 // pred_check_branch
    %27 = sbr.rel (0) target = $region29
  $region28: #{apnea_resnet_forward.1} parent=0 // pred_region
    _
  $region29: #{apnea_resnet_forward.1} parent=0 // pred_fallthru
    _
  // Predicated region
  $region30: #{apnea_resnet_forward.1} parent=0 // pred_check
    _
  $region31: #{apnea_resnet_forward.1} parent=0 // pred_check_branch
    %29 = sbr.rel (0) target = $region33
  $region32: #{apnea_resnet_forward.1} parent=0 // pred_region
    _
  $region33: #{apnea_resnet_forward.1} parent=0 // pred_fallthru
    _
  // Predicated region
  $region34: #{apnea_resnet_forward.1} parent=0 // pred_check
    _
  $region35: #{apnea_resnet_forward.1} parent=0 // pred_check_branch
    %31 = sbr.rel (0) target = $region37
  $region36: #{apnea_resnet_forward.1} parent=0 // pred_region
    _
  $region37: #{apnea_resnet_forward.1} parent=0 // pred_fallthru
    _
  %v32 = vld [vmem:[%s0] sm:$0xff]
  %v33 = vld [vmem:[%s0 + $0x8] sm:$0xff]
  %v34 = vld [vmem:[%s0 + $0x10] sm:$0xff]
  %v35 = vld [vmem:[%s0 + $0x18] sm:$0xff]
  %v36 = vld [vmem:[%s0 + $0x20] sm:$0xff]
  %v37 = vld [vmem:[%s0 + $0x28] sm:$0xff]
  %v38 = vld [vmem:[%s0 + $0x30] sm:$0xff]
  %v39 = vld [vmem:[%s0 + $0x38] sm:$0xff]
  %v40 = vld [vmem:[%s0 + $0x40] sm:$0xff]
  %v41 = vld [vmem:[%s0 + $0x48] sm:$0xff]
  %v42 = vld [vmem:[%s0 + $0x50] sm:$0xff]
  %v43 = vld [vmem:[%s0 + $0x58] sm:$0xff]
  %v44 = vld [vmem:[%s0 + $0x60] sm:$0xff]
  %v45 = vld [vmem:[%s0 + $0x68] sm:$0xff]
  %v46 = vld [vmem:[%s0 + $0x70] sm:$0xff]
  %v47 = vld [vmem:[%s0 + $0x78] sm:$0xff]
  %v48 = vld [vmem:[%s0 + $0x80] sm:$0xff]
  %v49 = vld [vmem:[%s0 + $0x88] sm:$0xff]
  %v50 = vld [vmem:[%s0 + $0x90] sm:$0xff]
  %v51 = vld [vmem:[%s0 + $0x98] sm:$0xff]
  %v52 = vld [vmem:[%s0 + $0xa0] sm:$0xff]
  %v53 = vld [vmem:[%s0 + $0xa8] sm:$0xff]
  %v54 = vld [vmem:[%s0 + $0xb0] sm:$0xff]
  %v55 = vld [vmem:[%s0 + $0xb8] sm:$0xff]
  %v56 = vld [vmem:[%s0 + $0xc0] sm:$0xff]
  %v57 = vld [vmem:[%s0 + $0xc8] sm:$0xff]
  %v58 = vld [vmem:[%s0 + $0xd0] sm:$0xff]
  %v59 = vld [vmem:[%s0 + $0xd8] sm:$0xff]
  %v60 = vld [vmem:[%s0 + $0xe0] sm:$0xff]
  %v61 = vld [vmem:[%s0 + $0xe8] sm:$0xff]
  %v62 = vld [vmem:[%s0 + $0xf0] sm:$0xff]
  %v63 = vld [vmem:[%s0 + $0xf8] sm:$0xff]
  %v64 = vld [vmem:[%s0 + $0x100] sm:$0xff]
  %v65 = vld [vmem:[%s0 + $0x108] sm:$0xff]
  %v66 = vld [vmem:[%s0 + $0x110] sm:$0xff]
  %v67 = vld [vmem:[%s0 + $0x118] sm:$0xff]
  %v68 = vld [vmem:[%s0 + $0x120] sm:$0xff]
  %v69 = vld [vmem:[%s0 + $0x128] sm:$0xff]
  %v70 = vld [vmem:[%s0 + $0x130] sm:$0xff]
  %v71 = vld [vmem:[%s0 + $0x138] sm:$0xff]
  %v72 = vld [vmem:[%s0 + $0x140] sm:$0xff]
  %v73 = vld [vmem:[%s0 + $0x148] sm:$0xff]
  %v74 = vld [vmem:[%s0 + $0x150] sm:$0xff]
  %v75 = vld [vmem:[%s0 + $0x158] sm:$0xff]
  %v76 = vld [vmem:[%s0 + $0x160] sm:$0xff]
  %v77 = vld [vmem:[%s0 + $0x168] sm:$0xff]
  %v78 = vld [vmem:[%s0 + $0x170] sm:$0xff]
  %v79 = vld [vmem:[%s0 + $0x178] sm:$0xff]
  %v80 = vld [vmem:[%s0 + $0x180] sm:$0xff]
  %v81 = vld [vmem:[%s0 + $0x188] sm:$0xff]
  %v82 = vld [vmem:[%s0 + $0x190] sm:$0xff]
  %v83 = vld [vmem:[%s0 + $0x198] sm:$0xff]
  %v84 = vld [vmem:[%s0 + $0x1a0] sm:$0xff]
  %v85 = vld [vmem:[%s0 + $0x1a8] sm:$0xff]
  %v86 = vld [vmem:[%s0 + $0x1b0] sm:$0xff]
  %v87 = vld [vmem:[%s0 + $0x1b8] sm:$0xff]
  %v88 = vld [vmem:[%s0 + $0x1c0] sm:$0xff]
  %v89 = vld [vmem:[%s0 + $0x1c8] sm:$0xff]
  %v90 = vld [vmem:[%s0 + $0x1d0] sm:$0xff]
  %v91 = vld [vmem:[%s0 + $0x1d8] sm:$0xff]
  %v92 = vld [vmem:[%s0 + $0x1e0] sm:$0xff]
  %v93 = vld [vmem:[%s0 + $0x1e8] sm:$0xff]
  %v94 = vld [vmem:[%s0 + $0x1f0] sm:$0xff]
  %v95 = vld [vmem:[%s0 + $0x1f8] sm:$0xff]
  %v96 = vld [vmem:[%s0 + $0x200] sm:$0xff]
  %v97 = vld [vmem:[%s0 + $0x208] sm:$0xff]
  %v98 = vld [vmem:[%s0 + $0x210] sm:$0xff]
  %v99 = vld [vmem:[%s0 + $0x218] sm:$0xff]
  %v100 = vld [vmem:[%s0 + $0x220] sm:$0xff]
  %v101 = vld [vmem:[%s0 + $0x228] sm:$0xff]
  %v102 = vld [vmem:[%s0 + $0x230] sm:$0xff]
  %v103 = vld [vmem:[%s0 + $0x238] sm:$0xff]
  %v104 = vld [vmem:[%s0 + $0x240] sm:$0xff]
  %v105 = vld [vmem:[%s0 + $0x248] sm:$0xff]
  %v106 = vld [vmem:[%s0 + $0x250] sm:$0xff]
  %v107 = vld [vmem:[%s0 + $0x258] sm:$0xff]
  %v108 = vld [vmem:[%s0 + $0x260] sm:$0xff]
  %v109 = vld [vmem:[%s0 + $0x268] sm:$0xff]
  %v110 = vld [vmem:[%s0 + $0x270] sm:$0xff]
  %v111 = vld [vmem:[%s0 + $0x278] sm:$0xff]
  %v112 = vld [vmem:[%s0 + $0x280] sm:$0xff]
  %v113 = vld [vmem:[%s0 + $0x288] sm:$0xff]
  %v114 = vld [vmem:[%s0 + $0x290] sm:$0xff]
  %v115 = vld [vmem:[%s0 + $0x298] sm:$0xff]
  %v116 = vld [vmem:[%s0 + $0x2a0] sm:$0xff]
  %v117 = vld [vmem:[%s0 + $0x2a8] sm:$0xff]
  %v118 = vld [vmem:[%s0 + $0x2b0] sm:$0xff]
  %v119 = vld [vmem:[%s0 + $0x2b8] sm:$0xff]
  %v120 = vld [vmem:[%s0 + $0x2c0] sm:$0xff]
  %v121 = vld [vmem:[%s0 + $0x2c8] sm:$0xff]
  %v122 = vld [vmem:[%s0 + $0x2d0] sm:$0xff]
  %v123 = vld [vmem:[%s0 + $0x2d8] sm:$0xff]
  %v124 = vld [vmem:[%s0 + $0x2e0] sm:$0xff]
  %v125 = vld [vmem:[%s0 + $0x2e8] sm:$0xff]
  %v126 = vld [vmem:[%s0 + $0x2f0] sm:$0xff]
  %v127 = vld [vmem:[%s0 + $0x2f8] sm:$0xff]
  %v128 = vld [vmem:[%s0 + $0x300] sm:$0xff]
  %v129 = vld [vmem:[%s0 + $0x308] sm:$0xff]
  %v130 = vld [vmem:[%s0 + $0x310] sm:$0xff]
  %v131 = vld [vmem:[%s0 + $0x318] sm:$0xff]
  %v132 = vld [vmem:[%s0 + $0x320] sm:$0xff]
  %v133 = vld [vmem:[%s0 + $0x328] sm:$0xff]
  %v134 = vld [vmem:[%s0 + $0x330] sm:$0xff]
  %v135 = vld [vmem:[%s0 + $0x338] sm:$0xff]
  %v136 = vld [vmem:[%s0 + $0x340] sm:$0xff]
  %v137 = vld [vmem:[%s0 + $0x348] sm:$0xff]
  %v138 = vld [vmem:[%s0 + $0x350] sm:$0xff]
  %v139 = vld [vmem:[%s0 + $0x358] sm:$0xff]
  %v140 = vld [vmem:[%s0 + $0x360] sm:$0xff]
  %v141 = vld [vmem:[%s0 + $0x368] sm:$0xff]
  %v142 = vld [vmem:[%s0 + $0x370] sm:$0xff]
  %v143 = vld [vmem:[%s0 + $0x378] sm:$0xff]
  %v144 = vld [vmem:[%s0 + $0x380] sm:$0xff]
  %v145 = vld [vmem:[%s0 + $0x388] sm:$0xff]
  %v146 = vld [vmem:[%s0 + $0x390] sm:$0xff]
  %v147 = vld [vmem:[%s0 + $0x398] sm:$0xff]
  %v148 = vld [vmem:[%s0 + $0x3a0] sm:$0xff]
  %v149 = vld [vmem:[%s0 + $0x3a8] sm:$0xff]
  %v150 = vld [vmem:[%s0 + $0x3b0] sm:$0xff]
  %v151 = vld [vmem:[%s0 + $0x3b8] sm:$0xff]
  %v152 = vld [vmem:[%s0 + $0x3c0] sm:$0xff]
  %v153 = vld [vmem:[%s0 + $0x3c8] sm:$0xff]
  %v154 = vld [vmem:[%s0 + $0x3d0] sm:$0xff]
  %v155 = vld [vmem:[%s0 + $0x3d8] sm:$0xff]
  %v156 = vld [vmem:[%s0 + $0x3e0] sm:$0xff]
  %v157 = vld [vmem:[%s0 + $0x3e8] sm:$0xff]
  %v158 = vld [vmem:[%s0 + $0x3f0] sm:$0xff]
  %v159 = vld [vmem:[%s0 + $0x3f8] sm:$0xff]
  %v160 = vld [vmem:[%s0 + $0x400] sm:$0xff]
  %v161 = vld [vmem:[%s0 + $0x408] sm:$0xff]
  %v162 = vld [vmem:[%s0 + $0x410] sm:$0xff]
  %v163 = vld [vmem:[%s0 + $0x418] sm:$0xff]
  %v164 = vld [vmem:[%s0 + $0x420] sm:$0xff]
  %v165 = vld [vmem:[%s0 + $0x428] sm:$0xff]
  %v166 = vld [vmem:[%s0 + $0x430] sm:$0xff]
  %v167 = vld [vmem:[%s0 + $0x438] sm:$0xff]
  %v168 = vld [vmem:[%s0 + $0x440] sm:$0xff]
  %v169 = vld [vmem:[%s0 + $0x448] sm:$0xff]
  %v170 = vld [vmem:[%s0 + $0x450] sm:$0xff]
  %v171 = vld [vmem:[%s0 + $0x458] sm:$0xff]
  %v172 = vld [vmem:[%s0 + $0x460] sm:$0xff]
  %v173 = vld [vmem:[%s0 + $0x468] sm:$0xff]
  %v174 = vld [vmem:[%s0 + $0x470] sm:$0xff]
  %v175 = vld [vmem:[%s0 + $0x478] sm:$0xff]
  %v176 = vld [vmem:[%s1] sm:$0xff]
  %v177 = vld [vmem:[%s1 + $0x8] sm:$0xff]
  %v178 = vld [vmem:[%s2] sm:$0x1]
  %v180 = vlaneseq
  %v181 = vshrl.u32 %v180, 7
  %v182 = vsub.s32 0, %v181
  %v183 = vrot.slane %v178, %v182
  %vm185 = vcmask 130048
  %v187 = vsel %vm185, %v32, 0
  %v190 = vsel %vm185, %v33, 0
  %v193 = vsel %vm185, %v34, 0
  %v196 = vsel %vm185, %v35, 0
  %v199 = vsel %vm185, %v36, 0
  %v202 = vsel %vm185, %v37, 0
  %v205 = vsel %vm185, %v38, 0
  %v208 = vsel %vm185, %v39, 0
  %v211 = vsel %vm185, %v40, 0
  %v214 = vsel %vm185, %v41, 0
  %v217 = vsel %vm185, %v42, 0
  %v220 = vsel %vm185, %v43, 0
  %v223 = vsel %vm185, %v44, 0
  %v226 = vsel %vm185, %v45, 0
  %v229 = vsel %vm185, %v46, 0
  %v232 = vsel %vm185, %v47, 0
  %v235 = vsel %vm185, %v48, 0
  %v238 = vsel %vm185, %v49, 0
  %v241 = vsel %vm185, %v50, 0
  %v244 = vsel %vm185, %v51, 0
  %v247 = vsel %vm185, %v52, 0
  %v250 = vsel %vm185, %v53, 0
  %v253 = vsel %vm185, %v54, 0
  %v256 = vsel %vm185, %v55, 0
  %v259 = vsel %vm185, %v56, 0
  %v262 = vsel %vm185, %v57, 0
  %v265 = vsel %vm185, %v58, 0
  %v268 = vsel %vm185, %v59, 0
  %v271 = vsel %vm185, %v60, 0
  %v274 = vsel %vm185, %v61, 0
  %v277 = vsel %vm185, %v62, 0
  %v280 = vsel %vm185, %v63, 0
  %v283 = vsel %vm185, %v64, 0
  %v286 = vsel %vm185, %v65, 0
  %v289 = vsel %vm185, %v66, 0
  %v292 = vsel %vm185, %v67, 0
  %v295 = vsel %vm185, %v68, 0
  %v298 = vsel %vm185, %v69, 0
  %v301 = vsel %vm185, %v70, 0
  %v304 = vsel %vm185, %v71, 0
  %v307 = vsel %vm185, %v72, 0
  %v310 = vsel %vm185, %v73, 0
  %v313 = vsel %vm185, %v74, 0
  %v316 = vsel %vm185, %v75, 0
  %v319 = vsel %vm185, %v76, 0
  %v322 = vsel %vm185, %v77, 0
  %v325 = vsel %vm185, %v78, 0
  %v328 = vsel %vm185, %v79, 0
  %v331 = vsel %vm185, %v80, 0
  %v334 = vsel %vm185, %v81, 0
  %v337 = vsel %vm185, %v82, 0
  %v340 = vsel %vm185, %v83, 0
  %v343 = vsel %vm185, %v84, 0
  %v346 = vsel %vm185, %v85, 0
  %v349 = vsel %vm185, %v86, 0
  %v352 = vsel %vm185, %v87, 0
  %v355 = vsel %vm185, %v88, 0
  %v358 = vsel %vm185, %v89, 0
  %v361 = vsel %vm185, %v90, 0
  %v364 = vsel %vm185, %v91, 0
  %v367 = vsel %vm185, %v92, 0
  %v370 = vsel %vm185, %v93, 0
  %v373 = vsel %vm185, %v94, 0
  %v376 = vsel %vm185, %v95, 0
  %v379 = vsel %vm185, %v96, 0
  %v382 = vsel %vm185, %v97, 0
  %v385 = vsel %vm185, %v98, 0
  %v388 = vsel %vm185, %v99, 0
  %v391 = vsel %vm185, %v100, 0
  %v394 = vsel %vm185, %v101, 0
  %v397 = vsel %vm185, %v102, 0
  %v400 = vsel %vm185, %v103, 0
  %v403 = vsel %vm185, %v104, 0
  %v406 = vsel %vm185, %v105, 0
  %v409 = vsel %vm185, %v106, 0
  %v412 = vsel %vm185, %v107, 0
  %v415 = vsel %vm185, %v108, 0
  %v418 = vsel %vm185, %v109, 0
  %v421 = vsel %vm185, %v110, 0
  %v424 = vsel %vm185, %v111, 0
  %v427 = vsel %vm185, %v112, 0
  %v430 = vsel %vm185, %v113, 0
  %v433 = vsel %vm185, %v114, 0
  %v436 = vsel %vm185, %v115, 0
  %v439 = vsel %vm185, %v116, 0
  %v442 = vsel %vm185, %v117, 0
  %v445 = vsel %vm185, %v118, 0
  %v448 = vsel %vm185, %v119, 0
  %v451 = vsel %vm185, %v120, 0
  %v454 = vsel %vm185, %v121, 0
  %v457 = vsel %vm185, %v122, 0
  %v460 = vsel %vm185, %v123, 0
  %v463 = vsel %vm185, %v124, 0
  %v466 = vsel %vm185, %v125, 0
  %v469 = vsel %vm185, %v126, 0
  %v472 = vsel %vm185, %v127, 0
  %v475 = vsel %vm185, %v128, 0
  %v478 = vsel %vm185, %v129, 0
  %v481 = vsel %vm185, %v130, 0
  %v484 = vsel %vm185, %v131, 0
  %v487 = vsel %vm185, %v132, 0
  %v490 = vsel %vm185, %v133, 0
  %v493 = vsel %vm185, %v134, 0
  %v496 = vsel %vm185, %v135, 0
  %v499 = vsel %vm185, %v136, 0
  %v502 = vsel %vm185, %v137, 0
  %v505 = vsel %vm185, %v138, 0
  %v508 = vsel %vm185, %v139, 0
  %v511 = vsel %vm185, %v140, 0
  %v514 = vsel %vm185, %v141, 0
  %v517 = vsel %vm185, %v142, 0
  %v520 = vsel %vm185, %v143, 0
  %v523 = vsel %vm185, %v144, 0
  %v526 = vsel %vm185, %v145, 0
  %v529 = vsel %vm185, %v146, 0
  %v532 = vsel %vm185, %v147, 0
  %v535 = vsel %vm185, %v148, 0
  %v538 = vsel %vm185, %v149, 0
  %v541 = vsel %vm185, %v150, 0
  %v544 = vsel %vm185, %v151, 0
  %v547 = vsel %vm185, %v152, 0
  %v550 = vsel %vm185, %v153, 0
  %v553 = vsel %vm185, %v154, 0
  %v556 = vsel %vm185, %v155, 0
  %v559 = vsel %vm185, %v156, 0
  %v562 = vsel %vm185, %v157, 0
  %v565 = vsel %vm185, %v158, 0
  %v568 = vsel %vm185, %v159, 0
  %v571 = vsel %vm185, %v160, 0
  %v574 = vsel %vm185, %v161, 0
  %v577 = vsel %vm185, %v162, 0
  %v580 = vsel %vm185, %v163, 0
  %v583 = vsel %vm185, %v164, 0
  %v586 = vsel %vm185, %v165, 0
  %v589 = vsel %vm185, %v166, 0
  %v592 = vsel %vm185, %v167, 0
  %v595 = vsel %vm185, %v168, 0
  %v598 = vsel %vm185, %v169, 0
  %v601 = vsel %vm185, %v170, 0
  %v604 = vsel %vm185, %v171, 0
  %v607 = vsel %vm185, %v172, 0
  %v610 = vsel %vm185, %v173, 0
  %v613 = vsel %vm185, %v174, 0
  %v616 = vsel %vm185, %v175, 0
  %618 = vmatprep.subr.mxu0 0.0
  %619 = vmatpush1.msra.mxu0 %v176
  %620 = vmatprep.subr.mxu0 0.0
  %621 = vmatpush1.msra.mxu0 %v177
  %622 = vmatprep.subr.mxu0 0.0
  %623 = vmatpush1.msra.mxu0 0.0
  %624 = vmatprep.subr.mxu0 0.0
  %625 = vmatpush1.msra.mxu0 0.0
  %626 = vmatprep.subr.mxu0 0.0
  %627 = vmatpush1.msra.mxu0 0.0
  %628 = vmatprep.subr.mxu0 0.0
  %629 = vmatpush1.msra.mxu0 0.0
  %630 = vmatprep.subr.mxu0 0.0
  %631 = vmatpush1.msra.mxu0 0.0
  %632 = vmatprep.subr.mxu0 0.0
  %633 = vmatpush1.msra.mxu0 0.0
  %634 = vmatprep.subr.mxu0 0.0
  %635 = vmatpush1.msra.mxu0 0.0
  %636 = vmatprep.subr.mxu0 0.0
  %637 = vmatpush1.msra.mxu0 0.0
  %638 = vmatprep.subr.mxu0 0.0
  %639 = vmatpush1.msra.mxu0 0.0
  %640 = vmatprep.subr.mxu0 0.0
  %641 = vmatpush1.msra.mxu0 0.0
  %642 = vmatprep.subr.mxu0 0.0
  %643 = vmatpush1.msra.mxu0 0.0
  %644 = vmatprep.subr.mxu0 0.0
  %645 = vmatpush1.msra.mxu0 0.0
  %646 = vmatprep.subr.mxu0 0.0
  %647 = vmatpush1.msra.mxu0 0.0
  %648 = vmatprep.subr.mxu0 0.0
  %649 = vmatpush1.msra.mxu0 0.0
  %650 = vmatprep.subr.mxu0 0.0
  %651 = vmatpush1.msra.mxu0 0.0
  %652 = vmatprep.subr.mxu0 0.0
  %653 = vmatpush1.msra.mxu0 0.0
  %654 = vmatprep.subr.mxu0 0.0
  %655 = vmatpush1.msra.mxu0 0.0
  %656 = vmatprep.subr.mxu0 0.0
  %657 = vmatpush1.msra.mxu0 0.0
  %658 = vmatprep.subr.mxu0 0.0
  %659 = vmatpush1.msra.mxu0 0.0
  %660 = vmatprep.subr.mxu0 0.0
  %661 = vmatpush1.msra.mxu0 0.0
  %662 = vmatprep.subr.mxu0 0.0
  %663 = vmatpush1.msra.mxu0 0.0
  %664 = vmatprep.subr.mxu0 0.0
  %665 = vmatpush1.msra.mxu0 0.0
  %666 = vmatprep.subr.mxu0 0.0
  %667 = vmatpush1.msra.mxu0 0.0
  %668 = vmatprep.subr.mxu0 0.0
  %669 = vmatpush1.msra.mxu0 0.0
  %670 = vmatprep.subr.mxu0 0.0
  %671 = vmatpush1.msra.mxu0 0.0
  %672 = vmatprep.subr.mxu0 0.0
  %673 = vmatpush1.msra.mxu0 0.0
  %674 = vmatprep.subr.mxu0 0.0
  %675 = vmatpush1.msra.mxu0 0.0
  %676 = vmatprep.subr.mxu0 0.0
  %677 = vmatpush1.msra.mxu0 0.0
  %678 = vmatprep.subr.mxu0 0.0
  %679 = vmatpush1.msra.mxu0 0.0
  %680 = vmatprep.subr.mxu0 0.0
  %681 = vmatpush1.msra.mxu0 0.0
  %682 = vmatprep.mubr.f32.mxu0 0.0
  %683 = vmatmul.mubr.f32.gmra.mrb[0].mxu0 %v187
  %v684 = vpop.f32.mrb[0].mxu0
  %v685 = vadd.f32 %v183, %v684
  %v686 = vpop.f32.mrb[0].mxu0
  %687 = vmatprep.mubr.f32.mxu0 0.0
  %688 = vmatmul.mubr.f32.gmra.mrb[0].mxu0 %v190
  %v689 = vpop.f32.mrb[0].mxu0
  %v690 = vadd.f32 %v183, %v689
  %v691 = vpop.f32.mrb[0].mxu0
  %692 = vmatprep.mubr.f32.mxu0 0.0
  %693 = vmatmul.mubr.f32.gmra.mrb[0].mxu0 %v193
  %v694 = vpop.f32.mrb[0].mxu0
  %v695 = vadd.f32 %v183, %v694
  %v696 = vpop.f32.mrb[0].mxu0
  %697 = vmatprep.mubr.f32.mxu0 0.0
  %698 = vmatmul.mubr.f32.gmra.mrb[0].mxu0 %v196
  %v699 = vpop.f32.mrb[0].mxu0
  %v700 = vadd.f32 %v183, %v699
  %v701 = vpop.f32.mrb[0].mxu0
  %702 = vmatprep.mubr.f32.mxu0 0.0
  %703 = vmatmul.mubr.f32.gmra.mrb[0].mxu0 %v199
  %v704 = vpop.f32.mrb[0].mxu0
  %v705 = vadd.f32 %v183, %v704
  %v706 = vpop.f32.mrb[0].mxu0
  %707 = vmatprep.mubr.f32.mxu0 0.0
  %708 = vmatmul.mubr.f32.gmra.mrb[0].mxu0 %v202
  %v709 = vpop.f32.mrb[0].mxu0
  %v710 = vadd.f32 %v183, %v709
  %v711 = vpop.f32.mrb[0].mxu0
  %712 = vmatprep.mubr.f32.mxu0 0.0
  %713 = vmatmul.mubr.f32.gmra.mrb[0].mxu0 %v205
  %v714 = vpop.f32.mrb[0].mxu0
  %v715 = vadd.f32 %v183, %v714
  %v716 = vpop.f32.mrb[0].mxu0
  %717 = vmatprep.mubr.f32.mxu0 0.0
  %718 = vmatmul.mubr.f32.gmra.mrb[0].mxu0 %v208
  %v719 = vpop.f32.mrb[0].mxu0
  %v720 = vadd.f32 %v183, %v719
  %v721 = vpop.f32.mrb[0].mxu0
  %722 = vmatprep.mubr.f32.mxu0 0.0
  %723 = vmatmul.mubr.f32.gmra.mrb[0].mxu0 %v211
  %v724 = vpop.f32.mrb[0].mxu0
  %v725 = vadd.f32 %v183, %v724
  %v726 = vpop.f32.mrb[0].mxu0
  %727 = vmatprep.mubr.f32.mxu0 0.0
  %728 = vmatmul.mubr.f32.gmra.mrb[0].mxu0 %v214
  %v729 = vpop.f32.mrb[0].mxu0
  %v730 = vadd.f32 %v183, %v729
  %v731 = vpop.f32.mrb[0].mxu0
  %732 = vmatprep.mubr.f32.mxu0 0.0
  %733 = vmatmul.mubr.f32.gmra.mrb[0].mxu0 %v217
  %v734 = vpop.f32.mrb[0].mxu0
  %v735 = vadd.f32 %v183, %v734
  %v736 = vpop.f32.mrb[0].mxu0
  %737 = vmatprep.mubr.f32.mxu0 0.0
  %738 = vmatmul.mubr.f32.gmra.mrb[0].mxu0 %v220
  %v739 = vpop.f32.mrb[0].mxu0
  %v740 = vadd.f32 %v183, %v739
  %v741 = vpop.f32.mrb[0].mxu0
  %742 = vmatprep.mubr.f32.mxu0 0.0
  %743 = vmatmul.mubr.f32.gmra.mrb[0].mxu0 %v223
  %v744 = vpop.f32.mrb[0].mxu0
  %v745 = vadd.f32 %v183, %v744
  %v746 = vpop.f32.mrb[0].mxu0
  %747 = vmatprep.mubr.f32.mxu0 0.0
  %748 = vmatmul.mubr.f32.gmra.mrb[0].mxu0 %v226
  %v749 = vpop.f32.mrb[0].mxu0
  %v750 = vadd.f32 %v183, %v749
  %v751 = vpop.f32.mrb[0].mxu0
  %752 = vmatprep.mubr.f32.mxu0 0.0
  %753 = vmatmul.mubr.f32.gmra.mrb[0].mxu0 %v229
  %v754 = vpop.f32.mrb[0].mxu0
  %v755 = vadd.f32 %v183, %v754
  %v756 = vpop.f32.mrb[0].mxu0
  %757 = vmatprep.mubr.f32.mxu0 0.0
  %758 = vmatmul.mubr.f32.gmra.mrb[0].mxu0 %v232
  %v759 = vpop.f32.mrb[0].mxu0
  %v760 = vadd.f32 %v183, %v759
  %v761 = vpop.f32.mrb[0].mxu0
  %762 = vmatprep.mubr.f32.mxu0 0.0
  %763 = vmatmul.mubr.f32.gmra.mrb[0].mxu0 %v235
  %v764 = vpop.f32.mrb[0].mxu0
  %v765 = vadd.f32 %v183, %v764
  %v766 = vpop.f32.mrb[0].mxu0
  %767 = vmatprep.mubr.f32.mxu0 0.0
  %768 = vmatmul.mubr.f32.gmra.mrb[0].mxu0 %v238
  %v769 = vpop.f32.mrb[0].mxu0
  %v770 = vadd.f32 %v183, %v769
  %v771 = vpop.f32.mrb[0].mxu0
  %772 = vmatprep.mubr.f32.mxu0 0.0
  %773 = vmatmul.mubr.f32.gmra.mrb[0].mxu0 %v241
  %v774 = vpop.f32.mrb[0].mxu0
  %v775 = vadd.f32 %v183, %v774
  %v776 = vpop.f32.mrb[0].mxu0
  %777 = vmatprep.mubr.f32.mxu0 0.0
  %778 = vmatmul.mubr.f32.gmra.mrb[0].mxu0 %v244
  %v779 = vpop.f32.mrb[0].mxu0
  %v780 = vadd.f32 %v183, %v779
  %v781 = vpop.f32.mrb[0].mxu0
  %782 = vmatprep.mubr.f32.mxu0 0.0
  %783 = vmatmul.mubr.f32.gmra.mrb[0].mxu0 %v247
  %v784 = vpop.f32.mrb[0].mxu0
  %v785 = vadd.f32 %v183, %v784
  %v786 = vpop.f32.mrb[0].mxu0
  %787 = vmatprep.mubr.f32.mxu0 0.0
  %788 = vmatmul.mubr.f32.gmra.mrb[0].mxu0 %v250
  %v789 = vpop.f32.mrb[0].mxu0
  %v790 = vadd.f32 %v183, %v789
  %v791 = vpop.f32.mrb[0].mxu0
  %792 = vmatprep.mubr.f32.mxu0 0.0
  %793 = vmatmul.mubr.f32.gmra.mrb[0].mxu0 %v253
  %v794 = vpop.f32.mrb[0].mxu0
  %v795 = vadd.f32 %v183, %v794
  %v796 = vpop.f32.mrb[0].mxu0
  %797 = vmatprep.mubr.f32.mxu0 0.0
  %798 = vmatmul.mubr.f32.gmra.mrb[0].mxu0 %v256
  %v799 = vpop.f32.mrb[0].mxu0
  %v800 = vadd.f32 %v183, %v799
  %v801 = vpop.f32.mrb[0].mxu0
  %802 = vmatprep.mubr.f32.mxu0 0.0
  %803 = vmatmul.mubr.f32.gmra.mrb[0].mxu0 %v259
  %v804 = vpop.f32.mrb[0].mxu0
  %v805 = vadd.f32 %v183, %v804
  %v806 = vpop.f32.mrb[0].mxu0
  %807 = vmatprep.mubr.f32.mxu0 0.0
  %808 = vmatmul.mubr.f32.gmra.mrb[0].mxu0 %v262
  %v809 = vpop.f32.mrb[0].mxu0
  %v810 = vadd.f32 %v183, %v809
  %v811 = vpop.f32.mrb[0].mxu0
  %812 = vmatprep.mubr.f32.mxu0 0.0
  %813 = vmatmul.mubr.f32.gmra.mrb[0].mxu0 %v265
  %v814 = vpop.f32.mrb[0].mxu0
  %v815 = vadd.f32 %v183, %v814
  %v816 = vpop.f32.mrb[0].mxu0
  %817 = vmatprep.mubr.f32.mxu0 0.0
  %818 = vmatmul.mubr.f32.gmra.mrb[0].mxu0 %v268
  %v819 = vpop.f32.mrb[0].mxu0
  %v820 = vadd.f32 %v183, %v819
  %v821 = vpop.f32.mrb[0].mxu0
  %822 = vmatprep.mubr.f32.mxu0 0.0
  %823 = vmatmul.mubr.f32.gmra.mrb[0].mxu0 %v271
  %v824 = vpop.f32.mrb[0].mxu0
  %v825 = vadd.f32 %v183, %v824
  %v826 = vpop.f32.mrb[0].mxu0
  %827 = vmatprep.mubr.f32.mxu0 0.0
  %828 = vmatmul.mubr.f32.gmra.mrb[0].mxu0 %v274
  %v829 = vpop.f32.mrb[0].mxu0
  %v830 = vadd.f32 %v183, %v829
  %v831 = vpop.f32.mrb[0].mxu0
  %832 = vmatprep.mubr.f32.mxu0 0.0
  %833 = vmatmul.mubr.f32.gmra.mrb[0].mxu0 %v277
  %v834 = vpop.f32.mrb[0].mxu0
  %v835 = vadd.f32 %v183, %v834
  %v836 = vpop.f32.mrb[0].mxu0
  %837 = vmatprep.mubr.f32.mxu0 0.0
  %838 = vmatmul.mubr.f32.gmra.mrb[0].mxu0 %v280
  %v839 = vpop.f32.mrb[0].mxu0
  %v840 = vadd.f32 %v183, %v839
  %v841 = vpop.f32.mrb[0].mxu0
  %842 = vmatprep.mubr.f32.mxu0 0.0
  %843 = vmatmul.mubr.f32.gmra.mrb[0].mxu0 %v283
  %v844 = vpop.f32.mrb[0].mxu0
  %v845 = vadd.f32 %v183, %v844
  %v846 = vpop.f32.mrb[0].mxu0
  %847 = vmatprep.mubr.f32.mxu0 0.0
  %848 = vmatmul.mubr.f32.gmra.mrb[0].mxu0 %v286
  %v849 = vpop.f32.mrb[0].mxu0
  %v850 = vadd.f32 %v183, %v849
  %v851 = vpop.f32.mrb[0].mxu0
  %852 = vmatprep.mubr.f32.mxu0 0.0
  %853 = vmatmul.mubr.f32.gmra.mrb[0].mxu0 %v289
  %v854 = vpop.f32.mrb[0].mxu0
  %v855 = vadd.f32 %v183, %v854
  %v856 = vpop.f32.mrb[0].mxu0
  %857 = vmatprep.mubr.f32.mxu0 0.0
  %858 = vmatmul.mubr.f32.gmra.mrb[0].mxu0 %v292
  %v859 = vpop.f32.mrb[0].mxu0
  %v860 = vadd.f32 %v183, %v859
  %v861 = vpop.f32.mrb[0].mxu0
  %862 = vmatprep.mubr.f32.mxu0 0.0
  %863 = vmatmul.mubr.f32.gmra.mrb[0].mxu0 %v295
  %v864 = vpop.f32.mrb[0].mxu0
  %v865 = vadd.f32 %v183, %v864
  %v866 = vpop.f32.mrb[0].mxu0
  %867 = vmatprep.mubr.f32.mxu0 0.0
  %868 = vmatmul.mubr.f32.gmra.mrb[0].mxu0 %v298
  %v869 = vpop.f32.mrb[0].mxu0
  %v870 = vadd.f32 %v183, %v869
  %v871 = vpop.f32.mrb[0].mxu0
  %872 = vmatprep.mubr.f32.mxu0 0.0
  %873 = vmatmul.mubr.f32.gmra.mrb[0].mxu0 %v301
  %v874 = vpop.f32.mrb[0].mxu0
  %v875 = vadd.f32 %v183, %v874
  %v876 = vpop.f32.mrb[0].mxu0
  %877 = vmatprep.mubr.f32.mxu0 0.0
  %878 = vmatmul.mubr.f32.gmra.mrb[0].mxu0 %v304
  %v879 = vpop.f32.mrb[0].mxu0
  %v880 = vadd.f32 %v183, %v879
  %v881 = vpop.f32.mrb[0].mxu0
  %882 = vmatprep.mubr.f32.mxu0 0.0
  %883 = vmatmul.mubr.f32.gmra.mrb[0].mxu0 %v307
  %v884 = vpop.f32.mrb[0].mxu0
  %v885 = vadd.f32 %v183, %v884
  %v886 = vpop.f32.mrb[0].mxu0
  %887 = vmatprep.mubr.f32.mxu0 0.0
  %888 = vmatmul.mubr.f32.gmra.mrb[0].mxu0 %v310
  %v889 = vpop.f32.mrb[0].mxu0
  %v890 = vadd.f32 %v183, %v889
  %v891 = vpop.f32.mrb[0].mxu0
  %892 = vmatprep.mubr.f32.mxu0 0.0
  %893 = vmatmul.mubr.f32.gmra.mrb[0].mxu0 %v313
  %v894 = vpop.f32.mrb[0].mxu0
  %v895 = vadd.f32 %v183, %v894
  %v896 = vpop.f32.mrb[0].mxu0
  %897 = vmatprep.mubr.f32.mxu0 0.0
  %898 = vmatmul.mubr.f32.gmra.mrb[0].mxu0 %v316
  %v899 = vpop.f32.mrb[0].mxu0
  %v900 = vadd.f32 %v183, %v899
  %v901 = vpop.f32.mrb[0].mxu0
  %902 = vmatprep.mubr.f32.mxu0 0.0
  %903 = vmatmul.mubr.f32.gmra.mrb[0].mxu0 %v319
  %v904 = vpop.f32.mrb[0].mxu0
  %v905 = vadd.f32 %v183, %v904
  %v906 = vpop.f32.mrb[0].mxu0
  %907 = vmatprep.mubr.f32.mxu0 0.0
  %908 = vmatmul.mubr.f32.gmra.mrb[0].mxu0 %v322
  %v909 = vpop.f32.mrb[0].mxu0
  %v910 = vadd.f32 %v183, %v909
  %v911 = vpop.f32.mrb[0].mxu0
  %912 = vmatprep.mubr.f32.mxu0 0.0
  %913 = vmatmul.mubr.f32.gmra.mrb[0].mxu0 %v325
  %v914 = vpop.f32.mrb[0].mxu0
  %v915 = vadd.f32 %v183, %v914
  %v916 = vpop.f32.mrb[0].mxu0
  %917 = vmatprep.mubr.f32.mxu0 0.0
  %918 = vmatmul.mubr.f32.gmra.mrb[0].mxu0 %v328
  %v919 = vpop.f32.mrb[0].mxu0
  %v920 = vadd.f32 %v183, %v919
  %v921 = vpop.f32.mrb[0].mxu0
  %922 = vmatprep.mubr.f32.mxu0 0.0
  %923 = vmatmul.mubr.f32.gmra.mrb[0].mxu0 %v331
  %v924 = vpop.f32.mrb[0].mxu0
  %v925 = vadd.f32 %v183, %v924
  %v926 = vpop.f32.mrb[0].mxu0
  %927 = vmatprep.mubr.f32.mxu0 0.0
  %928 = vmatmul.mubr.f32.gmra.mrb[0].mxu0 %v334
  %v929 = vpop.f32.mrb[0].mxu0
  %v930 = vadd.f32 %v183, %v929
  %v931 = vpop.f32.mrb[0].mxu0
  %932 = vmatprep.mubr.f32.mxu0 0.0
  %933 = vmatmul.mubr.f32.gmra.mrb[0].mxu0 %v337
  %v934 = vpop.f32.mrb[0].mxu0
  %v935 = vadd.f32 %v183, %v934
  %v936 = vpop.f32.mrb[0].mxu0
  %937 = vmatprep.mubr.f32.mxu0 0.0
  %938 = vmatmul.mubr.f32.gmra.mrb[0].mxu0 %v340
  %v939 = vpop.f32.mrb[0].mxu0
  %v940 = vadd.f32 %v183, %v939
  %v941 = vpop.f32.mrb[0].mxu0
  %942 = vmatprep.mubr.f32.mxu0 0.0
  %943 = vmatmul.mubr.f32.gmra.mrb[0].mxu0 %v343
  %v944 = vpop.f32.mrb[0].mxu0
  %v945 = vadd.f32 %v183, %v944
  %v946 = vpop.f32.mrb[0].mxu0
  %947 = vmatprep.mubr.f32.mxu0 0.0
  %948 = vmatmul.mubr.f32.gmra.mrb[0].mxu0 %v346
  %v949 = vpop.f32.mrb[0].mxu0
  %v950 = vadd.f32 %v183, %v949
  %v951 = vpop.f32.mrb[0].mxu0
  %952 = vmatprep.mubr.f32.mxu0 0.0
  %953 = vmatmul.mubr.f32.gmra.mrb[0].mxu0 %v349
  %v954 = vpop.f32.mrb[0].mxu0
  %v955 = vadd.f32 %v183, %v954
  %v956 = vpop.f32.mrb[0].mxu0
  %957 = vmatprep.mubr.f32.mxu0 0.0
  %958 = vmatmul.mubr.f32.gmra.mrb[0].mxu0 %v352
  %v959 = vpop.f32.mrb[0].mxu0
  %v960 = vadd.f32 %v183, %v959
  %v961 = vpop.f32.mrb[0].mxu0
  %962 = vmatprep.mubr.f32.mxu0 0.0
  %963 = vmatmul.mubr.f32.gmra.mrb[0].mxu0 %v355
  %v964 = vpop.f32.mrb[0].mxu0
  %v965 = vadd.f32 %v183, %v964
  %v966 = vpop.f32.mrb[0].mxu0
  %967 = vmatprep.mubr.f32.mxu0 0.0
  %968 = vmatmul.mubr.f32.gmra.mrb[0].mxu0 %v358
  %v969 = vpop.f32.mrb[0].mxu0
  %v970 = vadd.f32 %v183, %v969
  %v971 = vpop.f32.mrb[0].mxu0
  %972 = vmatprep.mubr.f32.mxu0 0.0
  %973 = vmatmul.mubr.f32.gmra.mrb[0].mxu0 %v361
  %v974 = vpop.f32.mrb[0].mxu0
  %v975 = vadd.f32 %v183, %v974
  %v976 = vpop.f32.mrb[0].mxu0
  %977 = vmatprep.mubr.f32.mxu0 0.0
  %978 = vmatmul.mubr.f32.gmra.mrb[0].mxu0 %v364
  %v979 = vpop.f32.mrb[0].mxu0
  %v980 = vadd.f32 %v183, %v979
  %v981 = vpop.f32.mrb[0].mxu0
  %982 = vmatprep.mubr.f32.mxu0 0.0
  %983 = vmatmul.mubr.f32.gmra.mrb[0].mxu0 %v367
  %v984 = vpop.f32.mrb[0].mxu0
  %v985 = vadd.f32 %v183, %v984
  %v986 = vpop.f32.mrb[0].mxu0
  %987 = vmatprep.mubr.f32.mxu0 0.0
  %988 = vmatmul.mubr.f32.gmra.mrb[0].mxu0 %v370
  %v989 = vpop.f32.mrb[0].mxu0
  %v990 = vadd.f32 %v183, %v989
  %v991 = vpop.f32.mrb[0].mxu0
  %992 = vmatprep.mubr.f32.mxu0 0.0
  %993 = vmatmul.mubr.f32.gmra.mrb[0].mxu0 %v373
  %v994 = vpop.f32.mrb[0].mxu0
  %v995 = vadd.f32 %v183, %v994
  %v996 = vpop.f32.mrb[0].mxu0
  %997 = vmatprep.mubr.f32.mxu0 0.0
  %998 = vmatmul.mubr.f32.gmra.mrb[0].mxu0 %v376
  %v999 = vpop.f32.mrb[0].mxu0
  %v1000 = vadd.f32 %v183, %v999
  %v1001 = vpop.f32.mrb[0].mxu0
  %1002 = vmatprep.mubr.f32.mxu0 0.0
  %1003 = vmatmul.mubr.f32.gmra.mrb[0].mxu0 %v379
  %v1004 = vpop.f32.mrb[0].mxu0
  %v1005 = vadd.f32 %v183, %v1004
  %v1006 = vpop.f32.mrb[0].mxu0
  %1007 = vmatprep.mubr.f32.mxu0 0.0
  %1008 = vmatmul.mubr.f32.gmra.mrb[0].mxu0 %v382
  %v1009 = vpop.f32.mrb[0].mxu0
  %v1010 = vadd.f32 %v183, %v1009
  %v1011 = vpop.f32.mrb[0].mxu0
  %1012 = vmatprep.mubr.f32.mxu0 0.0
  %1013 = vmatmul.mubr.f32.gmra.mrb[0].mxu0 %v385
  %v1014 = vpop.f32.mrb[0].mxu0
  %v1015 = vadd.f32 %v183, %v1014
  %v1016 = vpop.f32.mrb[0].mxu0
  %1017 = vmatprep.mubr.f32.mxu0 0.0
  %1018 = vmatmul.mubr.f32.gmra.mrb[0].mxu0 %v388
  %v1019 = vpop.f32.mrb[0].mxu0
  %v1020 = vadd.f32 %v183, %v1019
  %v1021 = vpop.f32.mrb[0].mxu0
  %1022 = vmatprep.mubr.f32.mxu0 0.0
  %1023 = vmatmul.mubr.f32.gmra.mrb[0].mxu0 %v391
  %v1024 = vpop.f32.mrb[0].mxu0
  %v1025 = vadd.f32 %v183, %v1024
  %v1026 = vpop.f32.mrb[0].mxu0
  %1027 = vmatprep.mubr.f32.mxu0 0.0
  %1028 = vmatmul.mubr.f32.gmra.mrb[0].mxu0 %v394
  %v1029 = vpop.f32.mrb[0].mxu0
  %v1030 = vadd.f32 %v183, %v1029
  %v1031 = vpop.f32.mrb[0].mxu0
  %1032 = vmatprep.mubr.f32.mxu0 0.0
  %1033 = vmatmul.mubr.f32.gmra.mrb[0].mxu0 %v397
  %v1034 = vpop.f32.mrb[0].mxu0
  %v1035 = vadd.f32 %v183, %v1034
  %v1036 = vpop.f32.mrb[0].mxu0
  %1037 = vmatprep.mubr.f32.mxu0 0.0
  %1038 = vmatmul.mubr.f32.gmra.mrb[0].mxu0 %v400
  %v1039 = vpop.f32.mrb[0].mxu0
  %v1040 = vadd.f32 %v183, %v1039
  %v1041 = vpop.f32.mrb[0].mxu0
  %1042 = vmatprep.mubr.f32.mxu0 0.0
  %1043 = vmatmul.mubr.f32.gmra.mrb[0].mxu0 %v403
  %v1044 = vpop.f32.mrb[0].mxu0
  %v1045 = vadd.f32 %v183, %v1044
  %v1046 = vpop.f32.mrb[0].mxu0
  %1047 = vmatprep.mubr.f32.mxu0 0.0
  %1048 = vmatmul.mubr.f32.gmra.mrb[0].mxu0 %v406
  %v1049 = vpop.f32.mrb[0].mxu0
  %v1050 = vadd.f32 %v183, %v1049
  %v1051 = vpop.f32.mrb[0].mxu0
  %1052 = vmatprep.mubr.f32.mxu0 0.0
  %1053 = vmatmul.mubr.f32.gmra.mrb[0].mxu0 %v409
  %v1054 = vpop.f32.mrb[0].mxu0
  %v1055 = vadd.f32 %v183, %v1054
  %v1056 = vpop.f32.mrb[0].mxu0
  %1057 = vmatprep.mubr.f32.mxu0 0.0
  %1058 = vmatmul.mubr.f32.gmra.mrb[0].mxu0 %v412
  %v1059 = vpop.f32.mrb[0].mxu0
  %v1060 = vadd.f32 %v183, %v1059
  %v1061 = vpop.f32.mrb[0].mxu0
  %1062 = vmatprep.mubr.f32.mxu0 0.0
  %1063 = vmatmul.mubr.f32.gmra.mrb[0].mxu0 %v415
  %v1064 = vpop.f32.mrb[0].mxu0
  %v1065 = vadd.f32 %v183, %v1064
  %v1066 = vpop.f32.mrb[0].mxu0
  %1067 = vmatprep.mubr.f32.mxu0 0.0
  %1068 = vmatmul.mubr.f32.gmra.mrb[0].mxu0 %v418
  %v1069 = vpop.f32.mrb[0].mxu0
  %v1070 = vadd.f32 %v183, %v1069
  %v1071 = vpop.f32.mrb[0].mxu0
  %1072 = vmatprep.mubr.f32.mxu0 0.0
  %1073 = vmatmul.mubr.f32.gmra.mrb[0].mxu0 %v421
  %v1074 = vpop.f32.mrb[0].mxu0
  %v1075 = vadd.f32 %v183, %v1074
  %v1076 = vpop.f32.mrb[0].mxu0
  %1077 = vmatprep.mubr.f32.mxu0 0.0
  %1078 = vmatmul.mubr.f32.gmra.mrb[0].mxu0 %v424
  %v1079 = vpop.f32.mrb[0].mxu0
  %v1080 = vadd.f32 %v183, %v1079
  %v1081 = vpop.f32.mrb[0].mxu0
  %1082 = vmatprep.mubr.f32.mxu0 0.0
  %1083 = vmatmul.mubr.f32.gmra.mrb[0].mxu0 %v427
  %v1084 = vpop.f32.mrb[0].mxu0
  %v1085 = vadd.f32 %v183, %v1084
  %v1086 = vpop.f32.mrb[0].mxu0
  %1087 = vmatprep.mubr.f32.mxu0 0.0
  %1088 = vmatmul.mubr.f32.gmra.mrb[0].mxu0 %v430
  %v1089 = vpop.f32.mrb[0].mxu0
  %v1090 = vadd.f32 %v183, %v1089
  %v1091 = vpop.f32.mrb[0].mxu0
  %1092 = vmatprep.mubr.f32.mxu0 0.0
  %1093 = vmatmul.mubr.f32.gmra.mrb[0].mxu0 %v433
  %v1094 = vpop.f32.mrb[0].mxu0
  %v1095 = vadd.f32 %v183, %v1094
  %v1096 = vpop.f32.mrb[0].mxu0
  %1097 = vmatprep.mubr.f32.mxu0 0.0
  %1098 = vmatmul.mubr.f32.gmra.mrb[0].mxu0 %v436
  %v1099 = vpop.f32.mrb[0].mxu0
  %v1100 = vadd.f32 %v183, %v1099
  %v1101 = vpop.f32.mrb[0].mxu0
  %1102 = vmatprep.mubr.f32.mxu0 0.0
  %1103 = vmatmul.mubr.f32.gmra.mrb[0].mxu0 %v439
  %v1104 = vpop.f32.mrb[0].mxu0
  %v1105 = vadd.f32 %v183, %v1104
  %v1106 = vpop.f32.mrb[0].mxu0
  %1107 = vmatprep.mubr.f32.mxu0 0.0
  %1108 = vmatmul.mubr.f32.gmra.mrb[0].mxu0 %v442
  %v1109 = vpop.f32.mrb[0].mxu0
  %v1110 = vadd.f32 %v183, %v1109
  %v1111 = vpop.f32.mrb[0].mxu0
  %1112 = vmatprep.mubr.f32.mxu0 0.0
  %1113 = vmatmul.mubr.f32.gmra.mrb[0].mxu0 %v445
  %v1114 = vpop.f32.mrb[0].mxu0
  %v1115 = vadd.f32 %v183, %v1114
  %v1116 = vpop.f32.mrb[0].mxu0
  %1117 = vmatprep.mubr.f32.mxu0 0.0
  %1118 = vmatmul.mubr.f32.gmra.mrb[0].mxu0 %v448
  %v1119 = vpop.f32.mrb[0].mxu0
  %v1120 = vadd.f32 %v183, %v1119
  %v1121 = vpop.f32.mrb[0].mxu0
  %1122 = vmatprep.mubr.f32.mxu0 0.0
  %1123 = vmatmul.mubr.f32.gmra.mrb[0].mxu0 %v451
  %v1124 = vpop.f32.mrb[0].mxu0
  %v1125 = vadd.f32 %v183, %v1124
  %v1126 = vpop.f32.mrb[0].mxu0
  %1127 = vmatprep.mubr.f32.mxu0 0.0
  %1128 = vmatmul.mubr.f32.gmra.mrb[0].mxu0 %v454
  %v1129 = vpop.f32.mrb[0].mxu0
  %v1130 = vadd.f32 %v183, %v1129
  %v1131 = vpop.f32.mrb[0].mxu0
  %1132 = vmatprep.mubr.f32.mxu0 0.0
  %1133 = vmatmul.mubr.f32.gmra.mrb[0].mxu0 %v457
  %v1134 = vpop.f32.mrb[0].mxu0
  %v1135 = vadd.f32 %v183, %v1134
  %v1136 = vpop.f32.mrb[0].mxu0
  %1137 = vmatprep.mubr.f32.mxu0 0.0
  %1138 = vmatmul.mubr.f32.gmra.mrb[0].mxu0 %v460
  %v1139 = vpop.f32.mrb[0].mxu0
  %v1140 = vadd.f32 %v183, %v1139
  %v1141 = vpop.f32.mrb[0].mxu0
  %1142 = vmatprep.mubr.f32.mxu0 0.0
  %1143 = vmatmul.mubr.f32.gmra.mrb[0].mxu0 %v463
  %v1144 = vpop.f32.mrb[0].mxu0
  %v1145 = vadd.f32 %v183, %v1144
  %v1146 = vpop.f32.mrb[0].mxu0
  %1147 = vmatprep.mubr.f32.mxu0 0.0
  %1148 = vmatmul.mubr.f32.gmra.mrb[0].mxu0 %v466
  %v1149 = vpop.f32.mrb[0].mxu0
  %v1150 = vadd.f32 %v183, %v1149
  %v1151 = vpop.f32.mrb[0].mxu0
  %1152 = vmatprep.mubr.f32.mxu0 0.0
  %1153 = vmatmul.mubr.f32.gmra.mrb[0].mxu0 %v469
  %v1154 = vpop.f32.mrb[0].mxu0
  %v1155 = vadd.f32 %v183, %v1154
  %v1156 = vpop.f32.mrb[0].mxu0
  %1157 = vmatprep.mubr.f32.mxu0 0.0
  %1158 = vmatmul.mubr.f32.gmra.mrb[0].mxu0 %v472
  %v1159 = vpop.f32.mrb[0].mxu0
  %v1160 = vadd.f32 %v183, %v1159
  %v1161 = vpop.f32.mrb[0].mxu0
  %1162 = vmatprep.mubr.f32.mxu0 0.0
  %1163 = vmatmul.mubr.f32.gmra.mrb[0].mxu0 %v475
  %v1164 = vpop.f32.mrb[0].mxu0
  %v1165 = vadd.f32 %v183, %v1164
  %v1166 = vpop.f32.mrb[0].mxu0
  %1167 = vmatprep.mubr.f32.mxu0 0.0
  %1168 = vmatmul.mubr.f32.gmra.mrb[0].mxu0 %v478
  %v1169 = vpop.f32.mrb[0].mxu0
  %v1170 = vadd.f32 %v183, %v1169
  %v1171 = vpop.f32.mrb[0].mxu0
  %1172 = vmatprep.mubr.f32.mxu0 0.0
  %1173 = vmatmul.mubr.f32.gmra.mrb[0].mxu0 %v481
  %v1174 = vpop.f32.mrb[0].mxu0
  %v1175 = vadd.f32 %v183, %v1174
  %v1176 = vpop.f32.mrb[0].mxu0
  %1177 = vmatprep.mubr.f32.mxu0 0.0
  %1178 = vmatmul.mubr.f32.gmra.mrb[0].mxu0 %v484
  %v1179 = vpop.f32.mrb[0].mxu0
  %v1180 = vadd.f32 %v183, %v1179
  %v1181 = vpop.f32.mrb[0].mxu0
  %1182 = vmatprep.mubr.f32.mxu0 0.0
  %1183 = vmatmul.mubr.f32.gmra.mrb[0].mxu0 %v487
  %v1184 = vpop.f32.mrb[0].mxu0
  %v1185 = vadd.f32 %v183, %v1184
  %v1186 = vpop.f32.mrb[0].mxu0
  %1187 = vmatprep.mubr.f32.mxu0 0.0
  %1188 = vmatmul.mubr.f32.gmra.mrb[0].mxu0 %v490
  %v1189 = vpop.f32.mrb[0].mxu0
  %v1190 = vadd.f32 %v183, %v1189
  %v1191 = vpop.f32.mrb[0].mxu0
  %1192 = vmatprep.mubr.f32.mxu0 0.0
  %1193 = vmatmul.mubr.f32.gmra.mrb[0].mxu0 %v493
  %v1194 = vpop.f32.mrb[0].mxu0
  %v1195 = vadd.f32 %v183, %v1194
  %v1196 = vpop.f32.mrb[0].mxu0
  %1197 = vmatprep.mubr.f32.mxu0 0.0
  %1198 = vmatmul.mubr.f32.gmra.mrb[0].mxu0 %v496
  %v1199 = vpop.f32.mrb[0].mxu0
  %v1200 = vadd.f32 %v183, %v1199
  %v1201 = vpop.f32.mrb[0].mxu0
  %1202 = vmatprep.mubr.f32.mxu0 0.0
  %1203 = vmatmul.mubr.f32.gmra.mrb[0].mxu0 %v499
  %v1204 = vpop.f32.mrb[0].mxu0
  %v1205 = vadd.f32 %v183, %v1204
  %v1206 = vpop.f32.mrb[0].mxu0
  %1207 = vmatprep.mubr.f32.mxu0 0.0
  %1208 = vmatmul.mubr.f32.gmra.mrb[0].mxu0 %v502
  %v1209 = vpop.f32.mrb[0].mxu0
  %v1210 = vadd.f32 %v183, %v1209
  %v1211 = vpop.f32.mrb[0].mxu0
  %1212 = vmatprep.mubr.f32.mxu0 0.0
  %1213 = vmatmul.mubr.f32.gmra.mrb[0].mxu0 %v505
  %v1214 = vpop.f32.mrb[0].mxu0
  %v1215 = vadd.f32 %v183, %v1214
  %v1216 = vpop.f32.mrb[0].mxu0
  %1217 = vmatprep.mubr.f32.mxu0 0.0
  %1218 = vmatmul.mubr.f32.gmra.mrb[0].mxu0 %v508
  %v1219 = vpop.f32.mrb[0].mxu0
  %v1220 = vadd.f32 %v183, %v1219
  %v1221 = vpop.f32.mrb[0].mxu0
  %1222 = vmatprep.mubr.f32.mxu0 0.0
  %1223 = vmatmul.mubr.f32.gmra.mrb[0].mxu0 %v511
  %v1224 = vpop.f32.mrb[0].mxu0
  %v1225 = vadd.f32 %v183, %v1224
  %v1226 = vpop.f32.mrb[0].mxu0
  %1227 = vmatprep.mubr.f32.mxu0 0.0
  %1228 = vmatmul.mubr.f32.gmra.mrb[0].mxu0 %v514
  %v1229 = vpop.f32.mrb[0].mxu0
  %v1230 = vadd.f32 %v183, %v1229
  %v1231 = vpop.f32.mrb[0].mxu0
  %1232 = vmatprep.mubr.f32.mxu0 0.0
  %1233 = vmatmul.mubr.f32.gmra.mrb[0].mxu0 %v517
  %v1234 = vpop.f32.mrb[0].mxu0
  %v1235 = vadd.f32 %v183, %v1234
  %v1236 = vpop.f32.mrb[0].mxu0
  %1237 = vmatprep.mubr.f32.mxu0 0.0
  %1238 = vmatmul.mubr.f32.gmra.mrb[0].mxu0 %v520
  %v1239 = vpop.f32.mrb[0].mxu0
  %v1240 = vadd.f32 %v183, %v1239
  %v1241 = vpop.f32.mrb[0].mxu0
  %1242 = vmatprep.mubr.f32.mxu0 0.0
  %1243 = vmatmul.mubr.f32.gmra.mrb[0].mxu0 %v523
  %v1244 = vpop.f32.mrb[0].mxu0
  %v1245 = vadd.f32 %v183, %v1244
  %v1246 = vpop.f32.mrb[0].mxu0
  %1247 = vmatprep.mubr.f32.mxu0 0.0
  %1248 = vmatmul.mubr.f32.gmra.mrb[0].mxu0 %v526
  %v1249 = vpop.f32.mrb[0].mxu0
  %v1250 = vadd.f32 %v183, %v1249
  %v1251 = vpop.f32.mrb[0].mxu0
  %1252 = vmatprep.mubr.f32.mxu0 0.0
  %1253 = vmatmul.mubr.f32.gmra.mrb[0].mxu0 %v529
  %v1254 = vpop.f32.mrb[0].mxu0
  %v1255 = vadd.f32 %v183, %v1254
  %v1256 = vpop.f32.mrb[0].mxu0
  %1257 = vmatprep.mubr.f32.mxu0 0.0
  %1258 = vmatmul.mubr.f32.gmra.mrb[0].mxu0 %v532
  %v1259 = vpop.f32.mrb[0].mxu0
  %v1260 = vadd.f32 %v183, %v1259
  %v1261 = vpop.f32.mrb[0].mxu0
  %1262 = vmatprep.mubr.f32.mxu0 0.0
  %1263 = vmatmul.mubr.f32.gmra.mrb[0].mxu0 %v535
  %v1264 = vpop.f32.mrb[0].mxu0
  %v1265 = vadd.f32 %v183, %v1264
  %v1266 = vpop.f32.mrb[0].mxu0
  %1267 = vmatprep.mubr.f32.mxu0 0.0
  %1268 = vmatmul.mubr.f32.gmra.mrb[0].mxu0 %v538
  %v1269 = vpop.f32.mrb[0].mxu0
  %v1270 = vadd.f32 %v183, %v1269
  %v1271 = vpop.f32.mrb[0].mxu0
  %1272 = vmatprep.mubr.f32.mxu0 0.0
  %1273 = vmatmul.mubr.f32.gmra.mrb[0].mxu0 %v541
  %v1274 = vpop.f32.mrb[0].mxu0
  %v1275 = vadd.f32 %v183, %v1274
  %v1276 = vpop.f32.mrb[0].mxu0
  %1277 = vmatprep.mubr.f32.mxu0 0.0
  %1278 = vmatmul.mubr.f32.gmra.mrb[0].mxu0 %v544
  %v1279 = vpop.f32.mrb[0].mxu0
  %v1280 = vadd.f32 %v183, %v1279
  %v1281 = vpop.f32.mrb[0].mxu0
  %1282 = vmatprep.mubr.f32.mxu0 0.0
  %1283 = vmatmul.mubr.f32.gmra.mrb[0].mxu0 %v547
  %v1284 = vpop.f32.mrb[0].mxu0
  %v1285 = vadd.f32 %v183, %v1284
  %v1286 = vpop.f32.mrb[0].mxu0
  %1287 = vmatprep.mubr.f32.mxu0 0.0
  %1288 = vmatmul.mubr.f32.gmra.mrb[0].mxu0 %v550
  %v1289 = vpop.f32.mrb[0].mxu0
  %v1290 = vadd.f32 %v183, %v1289
  %v1291 = vpop.f32.mrb[0].mxu0
  %1292 = vmatprep.mubr.f32.mxu0 0.0
  %1293 = vmatmul.mubr.f32.gmra.mrb[0].mxu0 %v553
  %v1294 = vpop.f32.mrb[0].mxu0
  %v1295 = vadd.f32 %v183, %v1294
  %v1296 = vpop.f32.mrb[0].mxu0
  %1297 = vmatprep.mubr.f32.mxu0 0.0
  %1298 = vmatmul.mubr.f32.gmra.mrb[0].mxu0 %v556
  %v1299 = vpop.f32.mrb[0].mxu0
  %v1300 = vadd.f32 %v183, %v1299
  %v1301 = vpop.f32.mrb[0].mxu0
  %1302 = vmatprep.mubr.f32.mxu0 0.0
  %1303 = vmatmul.mubr.f32.gmra.mrb[0].mxu0 %v559
  %v1304 = vpop.f32.mrb[0].mxu0
  %v1305 = vadd.f32 %v183, %v1304
  %v1306 = vpop.f32.mrb[0].mxu0
  %1307 = vmatprep.mubr.f32.mxu0 0.0
  %1308 = vmatmul.mubr.f32.gmra.mrb[0].mxu0 %v562
  %v1309 = vpop.f32.mrb[0].mxu0
  %v1310 = vadd.f32 %v183, %v1309
  %v1311 = vpop.f32.mrb[0].mxu0
  %1312 = vmatprep.mubr.f32.mxu0 0.0
  %1313 = vmatmul.mubr.f32.gmra.mrb[0].mxu0 %v565
  %v1314 = vpop.f32.mrb[0].mxu0
  %v1315 = vadd.f32 %v183, %v1314
  %v1316 = vpop.f32.mrb[0].mxu0
  %1317 = vmatprep.mubr.f32.mxu0 0.0
  %1318 = vmatmul.mubr.f32.gmra.mrb[0].mxu0 %v568
  %v1319 = vpop.f32.mrb[0].mxu0
  %v1320 = vadd.f32 %v183, %v1319
  %v1321 = vpop.f32.mrb[0].mxu0
  %1322 = vmatprep.mubr.f32.mxu0 0.0
  %1323 = vmatmul.mubr.f32.gmra.mrb[0].mxu0 %v571
  %v1324 = vpop.f32.mrb[0].mxu0
  %v1325 = vadd.f32 %v183, %v1324
  %v1326 = vpop.f32.mrb[0].mxu0
  %1327 = vmatprep.mubr.f32.mxu0 0.0
  %1328 = vmatmul.mubr.f32.gmra.mrb[0].mxu0 %v574
  %v1329 = vpop.f32.mrb[0].mxu0
  %v1330 = vadd.f32 %v183, %v1329
  %v1331 = vpop.f32.mrb[0].mxu0
  %1332 = vmatprep.mubr.f32.mxu0 0.0
  %1333 = vmatmul.mubr.f32.gmra.mrb[0].mxu0 %v577
  %v1334 = vpop.f32.mrb[0].mxu0
  %v1335 = vadd.f32 %v183, %v1334
  %v1336 = vpop.f32.mrb[0].mxu0
  %1337 = vmatprep.mubr.f32.mxu0 0.0
  %1338 = vmatmul.mubr.f32.gmra.mrb[0].mxu0 %v580
  %v1339 = vpop.f32.mrb[0].mxu0
  %v1340 = vadd.f32 %v183, %v1339
  %v1341 = vpop.f32.mrb[0].mxu0
  %1342 = vmatprep.mubr.f32.mxu0 0.0
  %1343 = vmatmul.mubr.f32.gmra.mrb[0].mxu0 %v583
  %v1344 = vpop.f32.mrb[0].mxu0
  %v1345 = vadd.f32 %v183, %v1344
  %v1346 = vpop.f32.mrb[0].mxu0
  %1347 = vmatprep.mubr.f32.mxu0 0.0
  %1348 = vmatmul.mubr.f32.gmra.mrb[0].mxu0 %v586
  %v1349 = vpop.f32.mrb[0].mxu0
  %v1350 = vadd.f32 %v183, %v1349
  %v1351 = vpop.f32.mrb[0].mxu0
  %1352 = vmatprep.mubr.f32.mxu0 0.0
  %1353 = vmatmul.mubr.f32.gmra.mrb[0].mxu0 %v589
  %v1354 = vpop.f32.mrb[0].mxu0
  %v1355 = vadd.f32 %v183, %v1354
  %v1356 = vpop.f32.mrb[0].mxu0
  %1357 = vmatprep.mubr.f32.mxu0 0.0
  %1358 = vmatmul.mubr.f32.gmra.mrb[0].mxu0 %v592
  %v1359 = vpop.f32.mrb[0].mxu0
  %v1360 = vadd.f32 %v183, %v1359
  %v1361 = vpop.f32.mrb[0].mxu0
  %1362 = vmatprep.mubr.f32.mxu0 0.0
  %1363 = vmatmul.mubr.f32.gmra.mrb[0].mxu0 %v595
  %v1364 = vpop.f32.mrb[0].mxu0
  %v1365 = vadd.f32 %v183, %v1364
  %v1366 = vpop.f32.mrb[0].mxu0
  %1367 = vmatprep.mubr.f32.mxu0 0.0
  %1368 = vmatmul.mubr.f32.gmra.mrb[0].mxu0 %v598
  %v1369 = vpop.f32.mrb[0].mxu0
  %v1370 = vadd.f32 %v183, %v1369
  %v1371 = vpop.f32.mrb[0].mxu0
  %1372 = vmatprep.mubr.f32.mxu0 0.0
  %1373 = vmatmul.mubr.f32.gmra.mrb[0].mxu0 %v601
  %v1374 = vpop.f32.mrb[0].mxu0
  %v1375 = vadd.f32 %v183, %v1374
  %v1376 = vpop.f32.mrb[0].mxu0
  %1377 = vmatprep.mubr.f32.mxu0 0.0
  %1378 = vmatmul.mubr.f32.gmra.mrb[0].mxu0 %v604
  %v1379 = vpop.f32.mrb[0].mxu0
  %v1380 = vadd.f32 %v183, %v1379
  %v1381 = vpop.f32.mrb[0].mxu0
  %1382 = vmatprep.mubr.f32.mxu0 0.0
  %1383 = vmatmul.mubr.f32.gmra.mrb[0].mxu0 %v607
  %v1384 = vpop.f32.mrb[0].mxu0
  %v1385 = vadd.f32 %v183, %v1384
  %v1386 = vpop.f32.mrb[0].mxu0
  %1387 = vmatprep.mubr.f32.mxu0 0.0
  %1388 = vmatmul.mubr.f32.gmra.mrb[0].mxu0 %v610
  %v1389 = vpop.f32.mrb[0].mxu0
  %v1390 = vadd.f32 %v183, %v1389
  %v1391 = vpop.f32.mrb[0].mxu0
  %1392 = vmatprep.mubr.f32.mxu0 0.0
  %1393 = vmatmul.mubr.f32.gmra.mrb[0].mxu0 %v613
  %v1394 = vpop.f32.mrb[0].mxu0
  %v1395 = vadd.f32 %v183, %v1394
  %v1396 = vpop.f32.mrb[0].mxu0
  %1397 = vmatprep.mubr.f32.mxu0 0.0
  %1398 = vmatmul.mubr.f32.gmra.mrb[0].mxu0 %v616
  %v1399 = vpop.f32.mrb[0].mxu0
  %v1400 = vadd.f32 %v183, %v1399
  %v1401 = vpop.f32.mrb[0].mxu0
  %1402 = vdwg.mxu0
  %v1403 = vmax.f32 %v685, 0.0
  %v1404 = vmax.f32 %v690, 0.0
  %v1405 = vmax.f32 %v695, 0.0
  %v1406 = vmax.f32 %v700, 0.0
  %v1407 = vmax.f32 %v705, 0.0
  %v1408 = vmax.f32 %v710, 0.0
  %v1409 = vmax.f32 %v715, 0.0
  %v1410 = vmax.f32 %v720, 0.0
  %v1411 = vmax.f32 %v725, 0.0
  %v1412 = vmax.f32 %v730, 0.0
  %v1413 = vmax.f32 %v735, 0.0
  %v1414 = vmax.f32 %v740, 0.0
  %v1415 = vmax.f32 %v745, 0.0
  %v1416 = vmax.f32 %v750, 0.0
  %v1417 = vmax.f32 %v755, 0.0
  %v1418 = vmax.f32 %v760, 0.0
  %v1419 = vmax.f32 %v765, 0.0
  %v1420 = vmax.f32 %v770, 0.0
  %v1421 = vmax.f32 %v775, 0.0
  %v1422 = vmax.f32 %v780, 0.0
  %v1423 = vmax.f32 %v785, 0.0
  %v1424 = vmax.f32 %v790, 0.0
  %v1425 = vmax.f32 %v795, 0.0
  %v1426 = vmax.f32 %v800, 0.0
  %v1427 = vmax.f32 %v805, 0.0
  %v1428 = vmax.f32 %v810, 0.0
  %v1429 = vmax.f32 %v815, 0.0
  %v1430 = vmax.f32 %v820, 0.0
  %v1431 = vmax.f32 %v825, 0.0
  %v1432 = vmax.f32 %v830, 0.0
  %v1433 = vmax.f32 %v835, 0.0
  %v1434 = vmax.f32 %v840, 0.0
  %v1435 = vmax.f32 %v845, 0.0
  %v1436 = vmax.f32 %v850, 0.0
  %v1437 = vmax.f32 %v855, 0.0
  %v1438 = vmax.f32 %v860, 0.0
  %v1439 = vmax.f32 %v865, 0.0
  %v1440 = vmax.f32 %v870, 0.0
  %v1441 = vmax.f32 %v875, 0.0
  %v1442 = vmax.f32 %v880, 0.0
  %v1443 = vmax.f32 %v885, 0.0
  %v1444 = vmax.f32 %v890, 0.0
  %v1445 = vmax.f32 %v895, 0.0
  %v1446 = vmax.f32 %v900, 0.0
  %v1447 = vmax.f32 %v905, 0.0
  %v1448 = vmax.f32 %v910, 0.0
  %v1449 = vmax.f32 %v915, 0.0
  %v1450 = vmax.f32 %v920, 0.0
  %v1451 = vmax.f32 %v925, 0.0
  %v1452 = vmax.f32 %v930, 0.0
  %v1453 = vmax.f32 %v935, 0.0
  %v1454 = vmax.f32 %v940, 0.0
  %v1455 = vmax.f32 %v945, 0.0
  %v1456 = vmax.f32 %v950, 0.0
  %v1457 = vmax.f32 %v955, 0.0
  %v1458 = vmax.f32 %v960, 0.0
  %v1459 = vmax.f32 %v965, 0.0
  %v1460 = vmax.f32 %v970, 0.0
  %v1461 = vmax.f32 %v975, 0.0
  %v1462 = vmax.f32 %v980, 0.0
  %v1463 = vmax.f32 %v985, 0.0
  %v1464 = vmax.f32 %v990, 0.0
  %v1465 = vmax.f32 %v995, 0.0
  %v1466 = vmax.f32 %v1000, 0.0
  %v1467 = vmax.f32 %v1005, 0.0
  %v1468 = vmax.f32 %v1010, 0.0
  %v1469 = vmax.f32 %v1015, 0.0
  %v1470 = vmax.f32 %v1020, 0.0
  %v1471 = vmax.f32 %v1025, 0.0
  %v1472 = vmax.f32 %v1030, 0.0
  %v1473 = vmax.f32 %v1035, 0.0
  %v1474 = vmax.f32 %v1040, 0.0
  %v1475 = vmax.f32 %v1045, 0.0
  %v1476 = vmax.f32 %v1050, 0.0
  %v1477 = vmax.f32 %v1055, 0.0
  %v1478 = vmax.f32 %v1060, 0.0
  %v1479 = vmax.f32 %v1065, 0.0
  %v1480 = vmax.f32 %v1070, 0.0
  %v1481 = vmax.f32 %v1075, 0.0
  %v1482 = vmax.f32 %v1080, 0.0
  %v1483 = vmax.f32 %v1085, 0.0
  %v1484 = vmax.f32 %v1090, 0.0
  %v1485 = vmax.f32 %v1095, 0.0
  %v1486 = vmax.f32 %v1100, 0.0
  %v1487 = vmax.f32 %v1105, 0.0
  %v1488 = vmax.f32 %v1110, 0.0
  %v1489 = vmax.f32 %v1115, 0.0
  %v1490 = vmax.f32 %v1120, 0.0
  %v1491 = vmax.f32 %v1125, 0.0
  %v1492 = vmax.f32 %v1130, 0.0
  %v1493 = vmax.f32 %v1135, 0.0
  %v1494 = vmax.f32 %v1140, 0.0
  %v1495 = vmax.f32 %v1145, 0.0
  %v1496 = vmax.f32 %v1150, 0.0
  %v1497 = vmax.f32 %v1155, 0.0
  %v1498 = vmax.f32 %v1160, 0.0
  %v1499 = vmax.f32 %v1165, 0.0
  %v1500 = vmax.f32 %v1170, 0.0
  %v1501 = vmax.f32 %v1175, 0.0
  %v1502 = vmax.f32 %v1180, 0.0
  %v1503 = vmax.f32 %v1185, 0.0
  %v1504 = vmax.f32 %v1190, 0.0
  %v1505 = vmax.f32 %v1195, 0.0
  %v1506 = vmax.f32 %v1200, 0.0
  %v1507 = vmax.f32 %v1205, 0.0
  %v1508 = vmax.f32 %v1210, 0.0
  %v1509 = vmax.f32 %v1215, 0.0
  %v1510 = vmax.f32 %v1220, 0.0
  %v1511 = vmax.f32 %v1225, 0.0
  %v1512 = vmax.f32 %v1230, 0.0
  %v1513 = vmax.f32 %v1235, 0.0
  %v1514 = vmax.f32 %v1240, 0.0
  %v1515 = vmax.f32 %v1245, 0.0
  %v1516 = vmax.f32 %v1250, 0.0
  %v1517 = vmax.f32 %v1255, 0.0
  %v1518 = vmax.f32 %v1260, 0.0
  %v1519 = vmax.f32 %v1265, 0.0
  %v1520 = vmax.f32 %v1270, 0.0
  %v1521 = vmax.f32 %v1275, 0.0
  %v1522 = vmax.f32 %v1280, 0.0
  %v1523 = vmax.f32 %v1285, 0.0
  %v1524 = vmax.f32 %v1290, 0.0
  %v1525 = vmax.f32 %v1295, 0.0
  %v1526 = vmax.f32 %v1300, 0.0
  %v1527 = vmax.f32 %v1305, 0.0
  %v1528 = vmax.f32 %v1310, 0.0
  %v1529 = vmax.f32 %v1315, 0.0
  %v1530 = vmax.f32 %v1320, 0.0
  %v1531 = vmax.f32 %v1325, 0.0
  %v1532 = vmax.f32 %v1330, 0.0
  %v1533 = vmax.f32 %v1335, 0.0
  %v1534 = vmax.f32 %v1340, 0.0
  %v1535 = vmax.f32 %v1345, 0.0
  %v1536 = vmax.f32 %v1350, 0.0
  %v1537 = vmax.f32 %v1355, 0.0
  %v1538 = vmax.f32 %v1360, 0.0
  %v1539 = vmax.f32 %v1365, 0.0
  %v1540 = vmax.f32 %v1370, 0.0
  %v1541 = vmax.f32 %v1375, 0.0
  %v1542 = vmax.f32 %v1380, 0.0
  %v1543 = vmax.f32 %v1385, 0.0
  %v1544 = vmax.f32 %v1390, 0.0
  %v1545 = vmax.f32 %v1395, 0.0
  %v1546 = vmax.f32 %v1400, 0.0
  %v1547 = vmax.f32 %v1403, %v1404
  %v1548 = vmax.f32 %v1405, %v1406
  %v1549 = vmax.f32 %v1407, %v1408
  %v1550 = vmax.f32 %v1409, %v1410
  %v1551 = vmax.f32 %v1411, %v1412
  %v1552 = vmax.f32 %v1413, %v1414
  %v1553 = vmax.f32 %v1415, %v1416
  %v1554 = vmax.f32 %v1417, %v1418
  %v1555 = vmax.f32 %v1419, %v1420
  %v1556 = vmax.f32 %v1421, %v1422
  %v1557 = vmax.f32 %v1423, %v1424
  %v1558 = vmax.f32 %v1425, %v1426
  %v1559 = vmax.f32 %v1427, %v1428
  %v1560 = vmax.f32 %v1429, %v1430
  %v1561 = vmax.f32 %v1431, %v1432
  %v1562 = vmax.f32 %v1433, %v1434
  %v1563 = vmax.f32 %v1435, %v1436
  %v1564 = vmax.f32 %v1437, %v1438
  %v1565 = vmax.f32 %v1439, %v1440
  %v1566 = vmax.f32 %v1441, %v1442
  %v1567 = vmax.f32 %v1443, %v1444
  %v1568 = vmax.f32 %v1445, %v1446
  %v1569 = vmax.f32 %v1447, %v1448
  %v1570 = vmax.f32 %v1449, %v1450
  %v1571 = vmax.f32 %v1451, %v1452
  %v1572 = vmax.f32 %v1453, %v1454
  %v1573 = vmax.f32 %v1455, %v1456
  %v1574 = vmax.f32 %v1457, %v1458
  %v1575 = vmax.f32 %v1459, %v1460
  %v1576 = vmax.f32 %v1461, %v1462
  %v1577 = vmax.f32 %v1463, %v1464
  %v1578 = vmax.f32 %v1465, %v1466
  %v1579 = vmax.f32 %v1467, %v1468
  %v1580 = vmax.f32 %v1469, %v1470
  %v1581 = vmax.f32 %v1471, %v1472
  %v1582 = vmax.f32 %v1473, %v1474
  %v1583 = vmax.f32 %v1475, %v1476
  %v1584 = vmax.f32 %v1477, %v1478
  %v1585 = vmax.f32 %v1479, %v1480
  %v1586 = vmax.f32 %v1481, %v1482
  %v1587 = vmax.f32 %v1483, %v1484
  %v1588 = vmax.f32 %v1485, %v1486
  %v1589 = vmax.f32 %v1487, %v1488
  %v1590 = vmax.f32 %v1489, %v1490
  %v1591 = vmax.f32 %v1491, %v1492
  %v1592 = vmax.f32 %v1493, %v1494
  %v1593 = vmax.f32 %v1495, %v1496
  %v1594 = vmax.f32 %v1497, %v1498
  %v1595 = vmax.f32 %v1499, %v1500
  %v1596 = vmax.f32 %v1501, %v1502
  %v1597 = vmax.f32 %v1503, %v1504
  %v1598 = vmax.f32 %v1505, %v1506
  %v1599 = vmax.f32 %v1507, %v1508
  %v1600 = vmax.f32 %v1509, %v1510
  %v1601 = vmax.f32 %v1511, %v1512
  %v1602 = vmax.f32 %v1513, %v1514
  %v1603 = vmax.f32 %v1515, %v1516
  %v1604 = vmax.f32 %v1517, %v1518
  %v1605 = vmax.f32 %v1519, %v1520
  %v1606 = vmax.f32 %v1521, %v1522
  %v1607 = vmax.f32 %v1523, %v1524
  %v1608 = vmax.f32 %v1525, %v1526
  %v1609 = vmax.f32 %v1527, %v1528
  %v1610 = vmax.f32 %v1529, %v1530
  %v1611 = vmax.f32 %v1531, %v1532
  %v1612 = vmax.f32 %v1533, %v1534
  %v1613 = vmax.f32 %v1535, %v1536
  %v1614 = vmax.f32 %v1537, %v1538
  %v1615 = vmax.f32 %v1539, %v1540
  %v1616 = vmax.f32 %v1541, %v1542
  %v1617 = vmax.f32 %v1543, %v1544
  %v1618 = vmax.f32 %v1545, %v1546
  %v1619 = vld [vmem:[%s3] sm:$0xff]
  %v1620 = vld [vmem:[%s3 + $0x8] sm:$0xff]
  %v1621 = vld [vmem:[%s3 + $0x10] sm:$0xff]
  %v1622 = vld [vmem:[%s3 + $0x18] sm:$0xff]
  %s1623 = scalar_lea.vmem %s3, 32
  %v1624 = vld [vmem:[%s1623] sm:$0xff]
  %v1625 = vld [vmem:[%s1623 + $0x8] sm:$0xff]
  %v1626 = vld [vmem:[%s1623 + $0x10] sm:$0xff]
  %v1627 = vld [vmem:[%s1623 + $0x18] sm:$0xff]
  %vm1628 = vcmask 261120
  %v1630 = vsel %vm1628, %v1548, 0
  %v1633 = vsel %vm1628, %v1551, 0
  %v1636 = vsel %vm1628, %v1554, 0
  %v1639 = vsel %vm1628, %v1557, 0
  %v1642 = vsel %vm1628, %v1560, 0
  %v1645 = vsel %vm1628, %v1563, 0
  %v1648 = vsel %vm1628, %v1566, 0
  %v1651 = vsel %vm1628, %v1569, 0
  %v1654 = vsel %vm1628, %v1572, 0
  %v1657 = vsel %vm1628, %v1575, 0
  %v1660 = vsel %vm1628, %v1578, 0
  %v1663 = vsel %vm1628, %v1581, 0
  %v1666 = vsel %vm1628, %v1584, 0
  %v1669 = vsel %vm1628, %v1587, 0
  %v1672 = vsel %vm1628, %v1590, 0
  %v1675 = vsel %vm1628, %v1593, 0
  %v1678 = vsel %vm1628, %v1596, 0
  %v1681 = vsel %vm1628, %v1599, 0
  %v1684 = vsel %vm1628, %v1602, 0
  %v1687 = vsel %vm1628, %v1605, 0
  %v1690 = vsel %vm1628, %v1608, 0
  %v1693 = vsel %vm1628, %v1611, 0
  %v1696 = vsel %vm1628, %v1614, 0
  %v1699 = vsel %vm1628, %v1617, 0
  %1701 = vmatprep.subr.mxu0 0.0
  %1702 = vmatpush1.msra.mxu0 %v1624
  %1703 = vmatprep.subr.mxu0 0.0
  %1704 = vmatpush1.msra.mxu0 %v1625
  %1705 = vmatprep.subr.mxu0 0.0
  %1706 = vmatpush1.msra.mxu0 %v1626
  %1707 = vmatprep.subr.mxu0 0.0
  %1708 = vmatpush1.msra.mxu0 %v1627
  %1709 = vmatprep.subr.mxu0 0.0
  %1710 = vmatpush1.msra.mxu0 0.0
  %1711 = vmatprep.subr.mxu0 0.0
  %1712 = vmatpush1.msra.mxu0 0.0
  %1713 = vmatprep.subr.mxu0 0.0
  %1714 = vmatpush1.msra.mxu0 0.0
  %1715 = vmatprep.subr.mxu0 0.0
  %1716 = vmatpush1.msra.mxu0 0.0
  %1717 = vmatprep.subr.mxu0 0.0
  %1718 = vmatpush1.msra.mxu0 0.0
  %1719 = vmatprep.subr.mxu0 0.0
  %1720 = vmatpush1.msra.mxu0 0.0
  %1721 = vmatprep.subr.mxu0 0.0
  %1722 = vmatpush1.msra.mxu0 0.0
  %1723 = vmatprep.subr.mxu0 0.0
  %1724 = vmatpush1.msra.mxu0 0.0
  %1725 = vmatprep.subr.mxu0 0.0
  %1726 = vmatpush1.msra.mxu0 0.0
  %1727 = vmatprep.subr.mxu0 0.0
  %1728 = vmatpush1.msra.mxu0 0.0
  %1729 = vmatprep.subr.mxu0 0.0
  %1730 = vmatpush1.msra.mxu0 0.0
  %1731 = vmatprep.subr.mxu0 0.0
  %1732 = vmatpush1.msra.mxu0 0.0
  %1733 = vmatprep.subr.mxu0 0.0
  %1734 = vmatpush1.msra.mxu0 0.0
  %1735 = vmatprep.subr.mxu0 0.0
  %1736 = vmatpush1.msra.mxu0 0.0
  %1737 = vmatprep.subr.mxu0 0.0
  %1738 = vmatpush1.msra.mxu0 0.0
  %1739 = vmatprep.subr.mxu0 0.0
  %1740 = vmatpush1.msra.mxu0 0.0
  %1741 = vmatprep.subr.mxu0 0.0
  %1742 = vmatpush1.msra.mxu0 0.0
  %1743 = vmatprep.subr.mxu0 0.0
  %1744 = vmatpush1.msra.mxu0 0.0
  %1745 = vmatprep.subr.mxu0 0.0
  %1746 = vmatpush1.msra.mxu0 0.0
  %1747 = vmatprep.subr.mxu0 0.0
  %1748 = vmatpush1.msra.mxu0 0.0
  %1749 = vmatprep.subr.mxu0 0.0
  %1750 = vmatpush1.msra.mxu0 0.0
  %1751 = vmatprep.subr.mxu0 0.0
  %1752 = vmatpush1.msra.mxu0 0.0
  %1753 = vmatprep.subr.mxu0 0.0
  %1754 = vmatpush1.msra.mxu0 0.0
  %1755 = vmatprep.subr.mxu0 0.0
  %1756 = vmatpush1.msra.mxu0 0.0
  %1757 = vmatprep.subr.mxu0 0.0
  %1758 = vmatpush1.msra.mxu0 0.0
  %1759 = vmatprep.subr.mxu0 0.0
  %1760 = vmatpush1.msra.mxu0 0.0
  %1761 = vmatprep.subr.mxu0 0.0
  %1762 = vmatpush1.msra.mxu0 0.0
  %1763 = vmatprep.subr.mxu0 0.0
  %1764 = vmatpush1.msra.mxu0 0.0
  %1765 = vmatprep.mubr.f32.mxu0 0.0
  %1766 = vmatmul.mubr.f32.gmra.mrb[0].mxu0 %v1630
  %v1767 = vpop.f32.mrb[0].mxu0
  %v1768 = vadd.f32 0.0, %v1767
  %v1769 = vpop.f32.mrb[0].mxu0
  %1770 = vmatprep.mubr.f32.mxu0 0.0
  %1771 = vmatmul.mubr.f32.gmra.mrb[0].mxu0 %v1633
  %v1772 = vpop.f32.mrb[0].mxu0
  %v1773 = vadd.f32 0.0, %v1772
  %v1774 = vpop.f32.mrb[0].mxu0
  %1775 = vmatprep.mubr.f32.mxu0 0.0
  %1776 = vmatmul.mubr.f32.gmra.mrb[0].mxu0 %v1636
  %v1777 = vpop.f32.mrb[0].mxu0
  %v1778 = vadd.f32 0.0, %v1777
  %v1779 = vpop.f32.mrb[0].mxu0
  %1780 = vmatprep.mubr.f32.mxu0 0.0
  %1781 = vmatmul.mubr.f32.gmra.mrb[0].mxu0 %v1639
  %v1782 = vpop.f32.mrb[0].mxu0
  %v1783 = vadd.f32 0.0, %v1782
  %v1784 = vpop.f32.mrb[0].mxu0
  %1785 = vmatprep.mubr.f32.mxu0 0.0
  %1786 = vmatmul.mubr.f32.gmra.mrb[0].mxu0 %v1642
  %v1787 = vpop.f32.mrb[0].mxu0
  %v1788 = vadd.f32 0.0, %v1787
  %v1789 = vpop.f32.mrb[0].mxu0
  %1790 = vmatprep.mubr.f32.mxu0 0.0
  %1791 = vmatmul.mubr.f32.gmra.mrb[0].mxu0 %v1645
  %v1792 = vpop.f32.mrb[0].mxu0
  %v1793 = vadd.f32 0.0, %v1792
  %v1794 = vpop.f32.mrb[0].mxu0
  %1795 = vmatprep.mubr.f32.mxu0 0.0
  %1796 = vmatmul.mubr.f32.gmra.mrb[0].mxu0 %v1648
  %v1797 = vpop.f32.mrb[0].mxu0
  %v1798 = vadd.f32 0.0, %v1797
  %v1799 = vpop.f32.mrb[0].mxu0
  %1800 = vmatprep.mubr.f32.mxu0 0.0
  %1801 = vmatmul.mubr.f32.gmra.mrb[0].mxu0 %v1651
  %v1802 = vpop.f32.mrb[0].mxu0
  %v1803 = vadd.f32 0.0, %v1802
  %v1804 = vpop.f32.mrb[0].mxu0
  %1805 = vmatprep.mubr.f32.mxu0 0.0
  %1806 = vmatmul.mubr.f32.gmra.mrb[0].mxu0 %v1654
  %v1807 = vpop.f32.mrb[0].mxu0
  %v1808 = vadd.f32 0.0, %v1807
  %v1809 = vpop.f32.mrb[0].mxu0
  %1810 = vmatprep.mubr.f32.mxu0 0.0
  %1811 = vmatmul.mubr.f32.gmra.mrb[0].mxu0 %v1657
  %v1812 = vpop.f32.mrb[0].mxu0
  %v1813 = vadd.f32 0.0, %v1812
  %v1814 = vpop.f32.mrb[0].mxu0
  %1815 = vmatprep.mubr.f32.mxu0 0.0
  %1816 = vmatmul.mubr.f32.gmra.mrb[0].mxu0 %v1660
  %v1817 = vpop.f32.mrb[0].mxu0
  %v1818 = vadd.f32 0.0, %v1817
  %v1819 = vpop.f32.mrb[0].mxu0
  %1820 = vmatprep.mubr.f32.mxu0 0.0
  %1821 = vmatmul.mubr.f32.gmra.mrb[0].mxu0 %v1663
  %v1822 = vpop.f32.mrb[0].mxu0
  %v1823 = vadd.f32 0.0, %v1822
  %v1824 = vpop.f32.mrb[0].mxu0
  %1825 = vmatprep.mubr.f32.mxu0 0.0
  %1826 = vmatmul.mubr.f32.gmra.mrb[0].mxu0 %v1666
  %v1827 = vpop.f32.mrb[0].mxu0
  %v1828 = vadd.f32 0.0, %v1827
  %v1829 = vpop.f32.mrb[0].mxu0
  %1830 = vmatprep.mubr.f32.mxu0 0.0
  %1831 = vmatmul.mubr.f32.gmra.mrb[0].mxu0 %v1669
  %v1832 = vpop.f32.mrb[0].mxu0
  %v1833 = vadd.f32 0.0, %v1832
  %v1834 = vpop.f32.mrb[0].mxu0
  %1835 = vmatprep.mubr.f32.mxu0 0.0
  %1836 = vmatmul.mubr.f32.gmra.mrb[0].mxu0 %v1672
  %v1837 = vpop.f32.mrb[0].mxu0
  %v1838 = vadd.f32 0.0, %v1837
  %v1839 = vpop.f32.mrb[0].mxu0
  %1840 = vmatprep.mubr.f32.mxu0 0.0
  %1841 = vmatmul.mubr.f32.gmra.mrb[0].mxu0 %v1675
  %v1842 = vpop.f32.mrb[0].mxu0
  %v1843 = vadd.f32 0.0, %v1842
  %v1844 = vpop.f32.mrb[0].mxu0
  %1845 = vmatprep.mubr.f32.mxu0 0.0
  %1846 = vmatmul.mubr.f32.gmra.mrb[0].mxu0 %v1678
  %v1847 = vpop.f32.mrb[0].mxu0
  %v1848 = vadd.f32 0.0, %v1847
  %v1849 = vpop.f32.mrb[0].mxu0
  %1850 = vmatprep.mubr.f32.mxu0 0.0
  %1851 = vmatmul.mubr.f32.gmra.mrb[0].mxu0 %v1681
  %v1852 = vpop.f32.mrb[0].mxu0
  %v1853 = vadd.f32 0.0, %v1852
  %v1854 = vpop.f32.mrb[0].mxu0
  %1855 = vmatprep.mubr.f32.mxu0 0.0
  %1856 = vmatmul.mubr.f32.gmra.mrb[0].mxu0 %v1684
  %v1857 = vpop.f32.mrb[0].mxu0
  %v1858 = vadd.f32 0.0, %v1857
  %v1859 = vpop.f32.mrb[0].mxu0
  %1860 = vmatprep.mubr.f32.mxu0 0.0
  %1861 = vmatmul.mubr.f32.gmra.mrb[0].mxu0 %v1687
  %v1862 = vpop.f32.mrb[0].mxu0
  %v1863 = vadd.f32 0.0, %v1862
  %v1864 = vpop.f32.mrb[0].mxu0
  %1865 = vmatprep.mubr.f32.mxu0 0.0
  %1866 = vmatmul.mubr.f32.gmra.mrb[0].mxu0 %v1690
  %v1867 = vpop.f32.mrb[0].mxu0
  %v1868 = vadd.f32 0.0, %v1867
  %v1869 = vpop.f32.mrb[0].mxu0
  %1870 = vmatprep.mubr.f32.mxu0 0.0
  %1871 = vmatmul.mubr.f32.gmra.mrb[0].mxu0 %v1693
  %v1872 = vpop.f32.mrb[0].mxu0
  %v1873 = vadd.f32 0.0, %v1872
  %v1874 = vpop.f32.mrb[0].mxu0
  %1875 = vmatprep.mubr.f32.mxu0 0.0
  %1876 = vmatmul.mubr.f32.gmra.mrb[0].mxu0 %v1696
  %v1877 = vpop.f32.mrb[0].mxu0
  %v1878 = vadd.f32 0.0, %v1877
  %v1879 = vpop.f32.mrb[0].mxu0
  %1880 = vmatprep.mubr.f32.mxu0 0.0
  %1881 = vmatmul.mubr.f32.gmra.mrb[0].mxu0 %v1699
  %v1882 = vpop.f32.mrb[0].mxu0
  %v1883 = vadd.f32 0.0, %v1882
  %v1884 = vpop.f32.mrb[0].mxu0
  %1885 = vdwg.mxu0
  %v1887 = vsel %vm1628, %v1547, 0
  %v1890 = vsel %vm1628, %v1550, 0
  %v1893 = vsel %vm1628, %v1553, 0
  %v1896 = vsel %vm1628, %v1556, 0
  %v1899 = vsel %vm1628, %v1559, 0
  %v1902 = vsel %vm1628, %v1562, 0
  %v1905 = vsel %vm1628, %v1565, 0
  %v1908 = vsel %vm1628, %v1568, 0
  %v1911 = vsel %vm1628, %v1571, 0
  %v1914 = vsel %vm1628, %v1574, 0
  %v1917 = vsel %vm1628, %v1577, 0
  %v1920 = vsel %vm1628, %v1580, 0
  %v1923 = vsel %vm1628, %v1583, 0
  %v1926 = vsel %vm1628, %v1586, 0
  %v1929 = vsel %vm1628, %v1589, 0
  %v1932 = vsel %vm1628, %v1592, 0
  %v1935 = vsel %vm1628, %v1595, 0
  %v1938 = vsel %vm1628, %v1598, 0
  %v1941 = vsel %vm1628, %v1601, 0
  %v1944 = vsel %vm1628, %v1604, 0
  %v1947 = vsel %vm1628, %v1607, 0
  %v1950 = vsel %vm1628, %v1610, 0
  %v1953 = vsel %vm1628, %v1613, 0
  %v1956 = vsel %vm1628, %v1616, 0
  %1958 = vmatprep.subr.mxu0 0.0
  %1959 = vmatpush1.msra.mxu0 %v1619
  %1960 = vmatprep.subr.mxu0 0.0
  %1961 = vmatpush1.msra.mxu0 %v1620
  %1962 = vmatprep.subr.mxu0 0.0
  %1963 = vmatpush1.msra.mxu0 %v1621
  %1964 = vmatprep.subr.mxu0 0.0
  %1965 = vmatpush1.msra.mxu0 %v1622
  %1966 = vmatprep.subr.mxu0 0.0
  %1967 = vmatpush1.msra.mxu0 0.0
  %1968 = vmatprep.subr.mxu0 0.0
  %1969 = vmatpush1.msra.mxu0 0.0
  %1970 = vmatprep.subr.mxu0 0.0
  %1971 = vmatpush1.msra.mxu0 0.0
  %1972 = vmatprep.subr.mxu0 0.0
  %1973 = vmatpush1.msra.mxu0 0.0
  %1974 = vmatprep.subr.mxu0 0.0
  %1975 = vmatpush1.msra.mxu0 0.0
  %1976 = vmatprep.subr.mxu0 0.0
  %1977 = vmatpush1.msra.mxu0 0.0
  %1978 = vmatprep.subr.mxu0 0.0
  %1979 = vmatpush1.msra.mxu0 0.0
  %1980 = vmatprep.subr.mxu0 0.0
  %1981 = vmatpush1.msra.mxu0 0.0
  %1982 = vmatprep.subr.mxu0 0.0
  %1983 = vmatpush1.msra.mxu0 0.0
  %1984 = vmatprep.subr.mxu0 0.0
  %1985 = vmatpush1.msra.mxu0 0.0
  %1986 = vmatprep.subr.mxu0 0.0
  %1987 = vmatpush1.msra.mxu0 0.0
  %1988 = vmatprep.subr.mxu0 0.0
  %1989 = vmatpush1.msra.mxu0 0.0
  %1990 = vmatprep.subr.mxu0 0.0
  %1991 = vmatpush1.msra.mxu0 0.0
  %1992 = vmatprep.subr.mxu0 0.0
  %1993 = vmatpush1.msra.mxu0 0.0
  %1994 = vmatprep.subr.mxu0 0.0
  %1995 = vmatpush1.msra.mxu0 0.0
  %1996 = vmatprep.subr.mxu0 0.0
  %1997 = vmatpush1.msra.mxu0 0.0
  %1998 = vmatprep.subr.mxu0 0.0
  %1999 = vmatpush1.msra.mxu0 0.0
  %2000 = vmatprep.subr.mxu0 0.0
  %2001 = vmatpush1.msra.mxu0 0.0
  %2002 = vmatprep.subr.mxu0 0.0
  %2003 = vmatpush1.msra.mxu0 0.0
  %2004 = vmatprep.subr.mxu0 0.0
  %2005 = vmatpush1.msra.mxu0 0.0
  %2006 = vmatprep.subr.mxu0 0.0
  %2007 = vmatpush1.msra.mxu0 0.0
  %2008 = vmatprep.subr.mxu0 0.0
  %2009 = vmatpush1.msra.mxu0 0.0
  %2010 = vmatprep.subr.mxu0 0.0
  %2011 = vmatpush1.msra.mxu0 0.0
  %2012 = vmatprep.subr.mxu0 0.0
  %2013 = vmatpush1.msra.mxu0 0.0
  %2014 = vmatprep.subr.mxu0 0.0
  %2015 = vmatpush1.msra.mxu0 0.0
  %2016 = vmatprep.subr.mxu0 0.0
  %2017 = vmatpush1.msra.mxu0 0.0
  %2018 = vmatprep.subr.mxu0 0.0
  %2019 = vmatpush1.msra.mxu0 0.0
  %2020 = vmatprep.subr.mxu0 0.0
  %2021 = vmatpush1.msra.mxu0 0.0
  %2022 = vmatprep.mubr.f32.mxu0 0.0
  %2023 = vmatmul.mubr.f32.gmra.mrb[0].mxu0 %v1887
  %v2024 = vpop.f32.mrb[0].mxu0
  %v2025 = vadd.f32 %v1768, %v2024
  %v2026 = vpop.f32.mrb[0].mxu0
  %2027 = vmatprep.mubr.f32.mxu0 0.0
  %2028 = vmatmul.mubr.f32.gmra.mrb[0].mxu0 %v1890
  %v2029 = vpop.f32.mrb[0].mxu0
  %v2030 = vadd.f32 %v1773, %v2029
  %v2031 = vpop.f32.mrb[0].mxu0
  %2032 = vmatprep.mubr.f32.mxu0 0.0
  %2033 = vmatmul.mubr.f32.gmra.mrb[0].mxu0 %v1893
  %v2034 = vpop.f32.mrb[0].mxu0
  %v2035 = vadd.f32 %v1778, %v2034
  %v2036 = vpop.f32.mrb[0].mxu0
  %2037 = vmatprep.mubr.f32.mxu0 0.0
  %2038 = vmatmul.mubr.f32.gmra.mrb[0].mxu0 %v1896
  %v2039 = vpop.f32.mrb[0].mxu0
  %v2040 = vadd.f32 %v1783, %v2039
  %v2041 = vpop.f32.mrb[0].mxu0
  %2042 = vmatprep.mubr.f32.mxu0 0.0
  %2043 = vmatmul.mubr.f32.gmra.mrb[0].mxu0 %v1899
  %v2044 = vpop.f32.mrb[0].mxu0
  %v2045 = vadd.f32 %v1788, %v2044
  %v2046 = vpop.f32.mrb[0].mxu0
  %2047 = vmatprep.mubr.f32.mxu0 0.0
  %2048 = vmatmul.mubr.f32.gmra.mrb[0].mxu0 %v1902
  %v2049 = vpop.f32.mrb[0].mxu0
  %v2050 = vadd.f32 %v1793, %v2049
  %v2051 = vpop.f32.mrb[0].mxu0
  %2052 = vmatprep.mubr.f32.mxu0 0.0
  %2053 = vmatmul.mubr.f32.gmra.mrb[0].mxu0 %v1905
  %v2054 = vpop.f32.mrb[0].mxu0
  %v2055 = vadd.f32 %v1798, %v2054
  %v2056 = vpop.f32.mrb[0].mxu0
  %2057 = vmatprep.mubr.f32.mxu0 0.0
  %2058 = vmatmul.mubr.f32.gmra.mrb[0].mxu0 %v1908
  %v2059 = vpop.f32.mrb[0].mxu0
  %v2060 = vadd.f32 %v1803, %v2059
  %v2061 = vpop.f32.mrb[0].mxu0
  %2062 = vmatprep.mubr.f32.mxu0 0.0
  %2063 = vmatmul.mubr.f32.gmra.mrb[0].mxu0 %v1911
  %v2064 = vpop.f32.mrb[0].mxu0
  %v2065 = vadd.f32 %v1808, %v2064
  %v2066 = vpop.f32.mrb[0].mxu0
  %2067 = vmatprep.mubr.f32.mxu0 0.0
  %2068 = vmatmul.mubr.f32.gmra.mrb[0].mxu0 %v1914
  %v2069 = vpop.f32.mrb[0].mxu0
  %v2070 = vadd.f32 %v1813, %v2069
  %v2071 = vpop.f32.mrb[0].mxu0
  %2072 = vmatprep.mubr.f32.mxu0 0.0
  %2073 = vmatmul.mubr.f32.gmra.mrb[0].mxu0 %v1917
  %v2074 = vpop.f32.mrb[0].mxu0
  %v2075 = vadd.f32 %v1818, %v2074
  %v2076 = vpop.f32.mrb[0].mxu0
  %2077 = vmatprep.mubr.f32.mxu0 0.0
  %2078 = vmatmul.mubr.f32.gmra.mrb[0].mxu0 %v1920
  %v2079 = vpop.f32.mrb[0].mxu0
  %v2080 = vadd.f32 %v1823, %v2079
  %v2081 = vpop.f32.mrb[0].mxu0
  %2082 = vmatprep.mubr.f32.mxu0 0.0
  %2083 = vmatmul.mubr.f32.gmra.mrb[0].mxu0 %v1923
  %v2084 = vpop.f32.mrb[0].mxu0
  %v2085 = vadd.f32 %v1828, %v2084
  %v2086 = vpop.f32.mrb[0].mxu0
  %2087 = vmatprep.mubr.f32.mxu0 0.0
  %2088 = vmatmul.mubr.f32.gmra.mrb[0].mxu0 %v1926
  %v2089 = vpop.f32.mrb[0].mxu0
  %v2090 = vadd.f32 %v1833, %v2089
  %v2091 = vpop.f32.mrb[0].mxu0
  %2092 = vmatprep.mubr.f32.mxu0 0.0
  %2093 = vmatmul.mubr.f32.gmra.mrb[0].mxu0 %v1929
  %v2094 = vpop.f32.mrb[0].mxu0
  %v2095 = vadd.f32 %v1838, %v2094
  %v2096 = vpop.f32.mrb[0].mxu0
  %2097 = vmatprep.mubr.f32.mxu0 0.0
  %2098 = vmatmul.mubr.f32.gmra.mrb[0].mxu0 %v1932
  %v2099 = vpop.f32.mrb[0].mxu0
  %v2100 = vadd.f32 %v1843, %v2099
  %v2101 = vpop.f32.mrb[0].mxu0
  %2102 = vmatprep.mubr.f32.mxu0 0.0
  %2103 = vmatmul.mubr.f32.gmra.mrb[0].mxu0 %v1935
  %v2104 = vpop.f32.mrb[0].mxu0
  %v2105 = vadd.f32 %v1848, %v2104
  %v2106 = vpop.f32.mrb[0].mxu0
  %2107 = vmatprep.mubr.f32.mxu0 0.0
  %2108 = vmatmul.mubr.f32.gmra.mrb[0].mxu0 %v1938
  %v2109 = vpop.f32.mrb[0].mxu0
  %v2110 = vadd.f32 %v1853, %v2109
  %v2111 = vpop.f32.mrb[0].mxu0
  %2112 = vmatprep.mubr.f32.mxu0 0.0
  %2113 = vmatmul.mubr.f32.gmra.mrb[0].mxu0 %v1941
  %v2114 = vpop.f32.mrb[0].mxu0
  %v2115 = vadd.f32 %v1858, %v2114
  %v2116 = vpop.f32.mrb[0].mxu0
  %2117 = vmatprep.mubr.f32.mxu0 0.0
  %2118 = vmatmul.mubr.f32.gmra.mrb[0].mxu0 %v1944
  %v2119 = vpop.f32.mrb[0].mxu0
  %v2120 = vadd.f32 %v1863, %v2119
  %v2121 = vpop.f32.mrb[0].mxu0
  %2122 = vmatprep.mubr.f32.mxu0 0.0
  %2123 = vmatmul.mubr.f32.gmra.mrb[0].mxu0 %v1947
  %v2124 = vpop.f32.mrb[0].mxu0
  %v2125 = vadd.f32 %v1868, %v2124
  %v2126 = vpop.f32.mrb[0].mxu0
  %2127 = vmatprep.mubr.f32.mxu0 0.0
  %2128 = vmatmul.mubr.f32.gmra.mrb[0].mxu0 %v1950
  %v2129 = vpop.f32.mrb[0].mxu0
  %v2130 = vadd.f32 %v1873, %v2129
  %v2131 = vpop.f32.mrb[0].mxu0
  %2132 = vmatprep.mubr.f32.mxu0 0.0
  %2133 = vmatmul.mubr.f32.gmra.mrb[0].mxu0 %v1953
  %v2134 = vpop.f32.mrb[0].mxu0
  %v2135 = vadd.f32 %v1878, %v2134
  %v2136 = vpop.f32.mrb[0].mxu0
  %2137 = vmatprep.mubr.f32.mxu0 0.0
  %2138 = vmatmul.mubr.f32.gmra.mrb[0].mxu0 %v1956
  %v2139 = vpop.f32.mrb[0].mxu0
  %v2140 = vadd.f32 %v1883, %v2139
  %v2141 = vpop.f32.mrb[0].mxu0
  %2142 = vdwg.mxu0
  %s2143 = scalar_lea.vmem %s3, 64
  %v2144 = vld [vmem:[%s2143] sm:$0xff]
  %v2145 = vld [vmem:[%s2143 + $0x8] sm:$0xff]
  %v2146 = vld [vmem:[%s2143 + $0x10] sm:$0xff]
  %v2147 = vld [vmem:[%s2143 + $0x18] sm:$0xff]
  %v2149 = vsel %vm1628, %v1549, 0
  %v2152 = vsel %vm1628, %v1552, 0
  %v2155 = vsel %vm1628, %v1555, 0
  %v2158 = vsel %vm1628, %v1558, 0
  %v2161 = vsel %vm1628, %v1561, 0
  %v2164 = vsel %vm1628, %v1564, 0
  %v2167 = vsel %vm1628, %v1567, 0
  %v2170 = vsel %vm1628, %v1570, 0
  %v2173 = vsel %vm1628, %v1573, 0
  %v2176 = vsel %vm1628, %v1576, 0
  %v2179 = vsel %vm1628, %v1579, 0
  %v2182 = vsel %vm1628, %v1582, 0
  %v2185 = vsel %vm1628, %v1585, 0
  %v2188 = vsel %vm1628, %v1588, 0
  %v2191 = vsel %vm1628, %v1591, 0
  %v2194 = vsel %vm1628, %v1594, 0
  %v2197 = vsel %vm1628, %v1597, 0
  %v2200 = vsel %vm1628, %v1600, 0
  %v2203 = vsel %vm1628, %v1603, 0
  %v2206 = vsel %vm1628, %v1606, 0
  %v2209 = vsel %vm1628, %v1609, 0
  %v2212 = vsel %vm1628, %v1612, 0
  %v2215 = vsel %vm1628, %v1615, 0
  %v2218 = vsel %vm1628, %v1618, 0
  %2220 = vmatprep.subr.mxu0 0.0
  %2221 = vmatpush1.msra.mxu0 %v2144
  %2222 = vmatprep.subr.mxu0 0.0
  %2223 = vmatpush1.msra.mxu0 %v2145
  %2224 = vmatprep.subr.mxu0 0.0
  %2225 = vmatpush1.msra.mxu0 %v2146
  %2226 = vmatprep.subr.mxu0 0.0
  %2227 = vmatpush1.msra.mxu0 %v2147
  %2228 = vmatprep.subr.mxu0 0.0
  %2229 = vmatpush1.msra.mxu0 0.0
  %2230 = vmatprep.subr.mxu0 0.0
  %2231 = vmatpush1.msra.mxu0 0.0
  %2232 = vmatprep.subr.mxu0 0.0
  %2233 = vmatpush1.msra.mxu0 0.0
  %2234 = vmatprep.subr.mxu0 0.0
  %2235 = vmatpush1.msra.mxu0 0.0
  %2236 = vmatprep.subr.mxu0 0.0
  %2237 = vmatpush1.msra.mxu0 0.0
  %2238 = vmatprep.subr.mxu0 0.0
  %2239 = vmatpush1.msra.mxu0 0.0
  %2240 = vmatprep.subr.mxu0 0.0
  %2241 = vmatpush1.msra.mxu0 0.0
  %2242 = vmatprep.subr.mxu0 0.0
  %2243 = vmatpush1.msra.mxu0 0.0
  %2244 = vmatprep.subr.mxu0 0.0
  %2245 = vmatpush1.msra.mxu0 0.0
  %2246 = vmatprep.subr.mxu0 0.0
  %2247 = vmatpush1.msra.mxu0 0.0
  %2248 = vmatprep.subr.mxu0 0.0
  %2249 = vmatpush1.msra.mxu0 0.0
  %2250 = vmatprep.subr.mxu0 0.0
  %2251 = vmatpush1.msra.mxu0 0.0
  %2252 = vmatprep.subr.mxu0 0.0
  %2253 = vmatpush1.msra.mxu0 0.0
  %2254 = vmatprep.subr.mxu0 0.0
  %2255 = vmatpush1.msra.mxu0 0.0
  %2256 = vmatprep.subr.mxu0 0.0
  %2257 = vmatpush1.msra.mxu0 0.0
  %2258 = vmatprep.subr.mxu0 0.0
  %2259 = vmatpush1.msra.mxu0 0.0
  %2260 = vmatprep.subr.mxu0 0.0
  %2261 = vmatpush1.msra.mxu0 0.0
  %2262 = vmatprep.subr.mxu0 0.0
  %2263 = vmatpush1.msra.mxu0 0.0
  %2264 = vmatprep.subr.mxu0 0.0
  %2265 = vmatpush1.msra.mxu0 0.0
  %2266 = vmatprep.subr.mxu0 0.0
  %2267 = vmatpush1.msra.mxu0 0.0
  %2268 = vmatprep.subr.mxu0 0.0
  %2269 = vmatpush1.msra.mxu0 0.0
  %2270 = vmatprep.subr.mxu0 0.0
  %2271 = vmatpush1.msra.mxu0 0.0
  %2272 = vmatprep.subr.mxu0 0.0
  %2273 = vmatpush1.msra.mxu0 0.0
  %2274 = vmatprep.subr.mxu0 0.0
  %2275 = vmatpush1.msra.mxu0 0.0
  %2276 = vmatprep.subr.mxu0 0.0
  %2277 = vmatpush1.msra.mxu0 0.0
  %2278 = vmatprep.subr.mxu0 0.0
  %2279 = vmatpush1.msra.mxu0 0.0
  %2280 = vmatprep.subr.mxu0 0.0
  %2281 = vmatpush1.msra.mxu0 0.0
  %2282 = vmatprep.subr.mxu0 0.0
  %2283 = vmatpush1.msra.mxu0 0.0
  %2284 = vmatprep.mubr.f32.mxu0 0.0
  %2285 = vmatmul.mubr.f32.gmra.mrb[0].mxu0 %v2149
  %v2286 = vpop.f32.mrb[0].mxu0
  %v2287 = vadd.f32 0.0, %v2286
  %v2288 = vpop.f32.mrb[0].mxu0
  %2289 = vmatprep.mubr.f32.mxu0 0.0
  %2290 = vmatmul.mubr.f32.gmra.mrb[0].mxu0 %v2152
  %v2291 = vpop.f32.mrb[0].mxu0
  %v2292 = vadd.f32 0.0, %v2291
  %v2293 = vpop.f32.mrb[0].mxu0
  %2294 = vmatprep.mubr.f32.mxu0 0.0
  %2295 = vmatmul.mubr.f32.gmra.mrb[0].mxu0 %v2155
  %v2296 = vpop.f32.mrb[0].mxu0
  %v2297 = vadd.f32 0.0, %v2296
  %v2298 = vpop.f32.mrb[0].mxu0
  %2299 = vmatprep.mubr.f32.mxu0 0.0
  %2300 = vmatmul.mubr.f32.gmra.mrb[0].mxu0 %v2158
  %v2301 = vpop.f32.mrb[0].mxu0
  %v2302 = vadd.f32 0.0, %v2301
  %v2303 = vpop.f32.mrb[0].mxu0
  %2304 = vmatprep.mubr.f32.mxu0 0.0
  %2305 = vmatmul.mubr.f32.gmra.mrb[0].mxu0 %v2161
  %v2306 = vpop.f32.mrb[0].mxu0
  %v2307 = vadd.f32 0.0, %v2306
  %v2308 = vpop.f32.mrb[0].mxu0
  %2309 = vmatprep.mubr.f32.mxu0 0.0
  %2310 = vmatmul.mubr.f32.gmra.mrb[0].mxu0 %v2164
  %v2311 = vpop.f32.mrb[0].mxu0
  %v2312 = vadd.f32 0.0, %v2311
  %v2313 = vpop.f32.mrb[0].mxu0
  %2314 = vmatprep.mubr.f32.mxu0 0.0
  %2315 = vmatmul.mubr.f32.gmra.mrb[0].mxu0 %v2167
  %v2316 = vpop.f32.mrb[0].mxu0
  %v2317 = vadd.f32 0.0, %v2316
  %v2318 = vpop.f32.mrb[0].mxu0
  %2319 = vmatprep.mubr.f32.mxu0 0.0
  %2320 = vmatmul.mubr.f32.gmra.mrb[0].mxu0 %v2170
  %v2321 = vpop.f32.mrb[0].mxu0
  %v2322 = vadd.f32 0.0, %v2321
  %v2323 = vpop.f32.mrb[0].mxu0
  %2324 = vmatprep.mubr.f32.mxu0 0.0
  %2325 = vmatmul.mubr.f32.gmra.mrb[0].mxu0 %v2173
  %v2326 = vpop.f32.mrb[0].mxu0
  %v2327 = vadd.f32 0.0, %v2326
  %v2328 = vpop.f32.mrb[0].mxu0
  %2329 = vmatprep.mubr.f32.mxu0 0.0
  %2330 = vmatmul.mubr.f32.gmra.mrb[0].mxu0 %v2176
  %v2331 = vpop.f32.mrb[0].mxu0
  %v2332 = vadd.f32 0.0, %v2331
  %v2333 = vpop.f32.mrb[0].mxu0
  %2334 = vmatprep.mubr.f32.mxu0 0.0
  %2335 = vmatmul.mubr.f32.gmra.mrb[0].mxu0 %v2179
  %v2336 = vpop.f32.mrb[0].mxu0
  %v2337 = vadd.f32 0.0, %v2336
  %v2338 = vpop.f32.mrb[0].mxu0
  %2339 = vmatprep.mubr.f32.mxu0 0.0
  %2340 = vmatmul.mubr.f32.gmra.mrb[0].mxu0 %v2182
  %v2341 = vpop.f32.mrb[0].mxu0
  %v2342 = vadd.f32 0.0, %v2341
  %v2343 = vpop.f32.mrb[0].mxu0
  %2344 = vmatprep.mubr.f32.mxu0 0.0
  %2345 = vmatmul.mubr.f32.gmra.mrb[0].mxu0 %v2185
  %v2346 = vpop.f32.mrb[0].mxu0
  %v2347 = vadd.f32 0.0, %v2346
  %v2348 = vpop.f32.mrb[0].mxu0
  %2349 = vmatprep.mubr.f32.mxu0 0.0
  %2350 = vmatmul.mubr.f32.gmra.mrb[0].mxu0 %v2188
  %v2351 = vpop.f32.mrb[0].mxu0
  %v2352 = vadd.f32 0.0, %v2351
  %v2353 = vpop.f32.mrb[0].mxu0
  %2354 = vmatprep.mubr.f32.mxu0 0.0
  %2355 = vmatmul.mubr.f32.gmra.mrb[0].mxu0 %v2191
  %v2356 = vpop.f32.mrb[0].mxu0
  %v2357 = vadd.f32 0.0, %v2356
  %v2358 = vpop.f32.mrb[0].mxu0
  %2359 = vmatprep.mubr.f32.mxu0 0.0
  %2360 = vmatmul.mubr.f32.gmra.mrb[0].mxu0 %v2194
  %v2361 = vpop.f32.mrb[0].mxu0
  %v2362 = vadd.f32 0.0, %v2361
  %v2363 = vpop.f32.mrb[0].mxu0
  %2364 = vmatprep.mubr.f32.mxu0 0.0
  %2365 = vmatmul.mubr.f32.gmra.mrb[0].mxu0 %v2197
  %v2366 = vpop.f32.mrb[0].mxu0
  %v2367 = vadd.f32 0.0, %v2366
  %v2368 = vpop.f32.mrb[0].mxu0
  %2369 = vmatprep.mubr.f32.mxu0 0.0
  %2370 = vmatmul.mubr.f32.gmra.mrb[0].mxu0 %v2200
  %v2371 = vpop.f32.mrb[0].mxu0
  %v2372 = vadd.f32 0.0, %v2371
  %v2373 = vpop.f32.mrb[0].mxu0
  %2374 = vmatprep.mubr.f32.mxu0 0.0
  %2375 = vmatmul.mubr.f32.gmra.mrb[0].mxu0 %v2203
  %v2376 = vpop.f32.mrb[0].mxu0
  %v2377 = vadd.f32 0.0, %v2376
  %v2378 = vpop.f32.mrb[0].mxu0
  %2379 = vmatprep.mubr.f32.mxu0 0.0
  %2380 = vmatmul.mubr.f32.gmra.mrb[0].mxu0 %v2206
  %v2381 = vpop.f32.mrb[0].mxu0
  %v2382 = vadd.f32 0.0, %v2381
  %v2383 = vpop.f32.mrb[0].mxu0
  %2384 = vmatprep.mubr.f32.mxu0 0.0
  %2385 = vmatmul.mubr.f32.gmra.mrb[0].mxu0 %v2209
  %v2386 = vpop.f32.mrb[0].mxu0
  %v2387 = vadd.f32 0.0, %v2386
  %v2388 = vpop.f32.mrb[0].mxu0
  %2389 = vmatprep.mubr.f32.mxu0 0.0
  %2390 = vmatmul.mubr.f32.gmra.mrb[0].mxu0 %v2212
  %v2391 = vpop.f32.mrb[0].mxu0
  %v2392 = vadd.f32 0.0, %v2391
  %v2393 = vpop.f32.mrb[0].mxu0
  %2394 = vmatprep.mubr.f32.mxu0 0.0
  %2395 = vmatmul.mubr.f32.gmra.mrb[0].mxu0 %v2215
  %v2396 = vpop.f32.mrb[0].mxu0
  %v2397 = vadd.f32 0.0, %v2396
  %v2398 = vpop.f32.mrb[0].mxu0
  %2399 = vmatprep.mubr.f32.mxu0 0.0
  %2400 = vmatmul.mubr.f32.gmra.mrb[0].mxu0 %v2218
  %v2401 = vpop.f32.mrb[0].mxu0
  %v2402 = vadd.f32 0.0, %v2401
  %v2403 = vpop.f32.mrb[0].mxu0
  %2404 = vdwg.mxu0
  %v2405 = vadd.f32 %v2025, %v2287
  %v2406 = vadd.f32 %v2030, %v2292
  %v2407 = vadd.f32 %v2035, %v2297
  %v2408 = vadd.f32 %v2040, %v2302
  %v2409 = vadd.f32 %v2045, %v2307
  %v2410 = vadd.f32 %v2050, %v2312
  %v2411 = vadd.f32 %v2055, %v2317
  %v2412 = vadd.f32 %v2060, %v2322
  %v2413 = vadd.f32 %v2065, %v2327
  %v2414 = vadd.f32 %v2070, %v2332
  %v2415 = vadd.f32 %v2075, %v2337
  %v2416 = vadd.f32 %v2080, %v2342
  %v2417 = vadd.f32 %v2085, %v2347
  %v2418 = vadd.f32 %v2090, %v2352
  %v2419 = vadd.f32 %v2095, %v2357
  %v2420 = vadd.f32 %v2100, %v2362
  %v2421 = vadd.f32 %v2105, %v2367
  %v2422 = vadd.f32 %v2110, %v2372
  %v2423 = vadd.f32 %v2115, %v2377
  %v2424 = vadd.f32 %v2120, %v2382
  %v2425 = vadd.f32 %v2125, %v2387
  %v2426 = vadd.f32 %v2130, %v2392
  %v2427 = vadd.f32 %v2135, %v2397
  %v2428 = vadd.f32 %v2140, %v2402
  %v2429 = vld [vmem:[%s4] sm:$0x1]
  %v2431 = vlaneseq
  %v2432 = vshrl.u32 %v2431, 7
  %v2433 = vsub.s32 0, %v2432
  %v2434 = vrot.slane %v2429, %v2433
  %v2436 = vadd.f32 %v2405, %v2434
  %v2437 = vadd.f32 %v2406, %v2434
  %v2438 = vadd.f32 %v2407, %v2434
  %v2439 = vadd.f32 %v2408, %v2434
  %v2440 = vadd.f32 %v2409, %v2434
  %v2441 = vadd.f32 %v2410, %v2434
  %v2442 = vadd.f32 %v2411, %v2434
  %v2443 = vadd.f32 %v2412, %v2434
  %v2444 = vadd.f32 %v2413, %v2434
  %v2445 = vadd.f32 %v2414, %v2434
  %v2446 = vadd.f32 %v2415, %v2434
  %v2447 = vadd.f32 %v2416, %v2434
  %v2448 = vadd.f32 %v2417, %v2434
  %v2449 = vadd.f32 %v2418, %v2434
  %v2450 = vadd.f32 %v2419, %v2434
  %v2451 = vadd.f32 %v2420, %v2434
  %v2452 = vadd.f32 %v2421, %v2434
  %v2453 = vadd.f32 %v2422, %v2434
  %v2454 = vadd.f32 %v2423, %v2434
  %v2455 = vadd.f32 %v2424, %v2434
  %v2456 = vadd.f32 %v2425, %v2434
  %v2457 = vadd.f32 %v2426, %v2434
  %v2458 = vadd.f32 %v2427, %v2434
  %v2459 = vadd.f32 %v2428, %v2434
  %v2460 = vmax.f32 %v2436, 0.0
  %v2461 = vmax.f32 %v2437, 0.0
  %v2462 = vmax.f32 %v2438, 0.0
  %v2463 = vmax.f32 %v2439, 0.0
  %v2464 = vmax.f32 %v2440, 0.0
  %v2465 = vmax.f32 %v2441, 0.0
  %v2466 = vmax.f32 %v2442, 0.0
  %v2467 = vmax.f32 %v2443, 0.0
  %v2468 = vmax.f32 %v2444, 0.0
  %v2469 = vmax.f32 %v2445, 0.0
  %v2470 = vmax.f32 %v2446, 0.0
  %v2471 = vmax.f32 %v2447, 0.0
  %v2472 = vmax.f32 %v2448, 0.0
  %v2473 = vmax.f32 %v2449, 0.0
  %v2474 = vmax.f32 %v2450, 0.0
  %v2475 = vmax.f32 %v2451, 0.0
  %v2476 = vmax.f32 %v2452, 0.0
  %v2477 = vmax.f32 %v2453, 0.0
  %v2478 = vmax.f32 %v2454, 0.0
  %v2479 = vmax.f32 %v2455, 0.0
  %v2480 = vmax.f32 %v2456, 0.0
  %v2481 = vmax.f32 %v2457, 0.0
  %v2482 = vmax.f32 %v2458, 0.0
  %v2483 = vmax.f32 %v2459, 0.0
  %v2484 = vmax.f32 %v2460, %v2461
  %v2485 = vmax.f32 %v2462, %v2463
  %v2486 = vmax.f32 %v2464, %v2465
  %v2487 = vmax.f32 %v2466, %v2467
  %v2488 = vmax.f32 %v2468, %v2469
  %v2489 = vmax.f32 %v2470, %v2471
  %v2490 = vmax.f32 %v2472, %v2473
  %v2491 = vmax.f32 %v2474, %v2475
  %v2492 = vmax.f32 %v2476, %v2477
  %v2493 = vmax.f32 %v2478, %v2479
  %v2494 = vmax.f32 %v2480, %v2481
  %v2495 = vmax.f32 %v2482, %v2483
  %v2496 = vld [vmem:[%s5] sm:$0xff]
  %v2497 = vld [vmem:[%s5 + $0x8] sm:$0xff]
  %v2498 = vld [vmem:[%s5 + $0x10] sm:$0xff]
  %v2499 = vld [vmem:[%s5 + $0x18] sm:$0xff]
  %s2500 = scalar_lea.vmem %s5, 32
  %v2501 = vld [vmem:[%s2500] sm:$0xff]
  %v2502 = vld [vmem:[%s2500 + $0x8] sm:$0xff]
  %v2503 = vld [vmem:[%s2500 + $0x10] sm:$0xff]
  %v2504 = vld [vmem:[%s2500 + $0x18] sm:$0xff]
  %v2506 = vsel %vm1628, %v2485, 0
  %v2509 = vsel %vm1628, %v2488, 0
  %v2512 = vsel %vm1628, %v2491, 0
  %v2515 = vsel %vm1628, %v2494, 0
  %2517 = vmatprep.subr.mxu0 0.0
  %2518 = vmatpush1.msra.mxu0 %v2501
  %2519 = vmatprep.subr.mxu0 0.0
  %2520 = vmatpush1.msra.mxu0 %v2502
  %2521 = vmatprep.subr.mxu0 0.0
  %2522 = vmatpush1.msra.mxu0 %v2503
  %2523 = vmatprep.subr.mxu0 0.0
  %2524 = vmatpush1.msra.mxu0 %v2504
  %2525 = vmatprep.subr.mxu0 0.0
  %2526 = vmatpush1.msra.mxu0 0.0
  %2527 = vmatprep.subr.mxu0 0.0
  %2528 = vmatpush1.msra.mxu0 0.0
  %2529 = vmatprep.subr.mxu0 0.0
  %2530 = vmatpush1.msra.mxu0 0.0
  %2531 = vmatprep.subr.mxu0 0.0
  %2532 = vmatpush1.msra.mxu0 0.0
  %2533 = vmatprep.subr.mxu0 0.0
  %2534 = vmatpush1.msra.mxu0 0.0
  %2535 = vmatprep.subr.mxu0 0.0
  %2536 = vmatpush1.msra.mxu0 0.0
  %2537 = vmatprep.subr.mxu0 0.0
  %2538 = vmatpush1.msra.mxu0 0.0
  %2539 = vmatprep.subr.mxu0 0.0
  %2540 = vmatpush1.msra.mxu0 0.0
  %2541 = vmatprep.subr.mxu0 0.0
  %2542 = vmatpush1.msra.mxu0 0.0
  %2543 = vmatprep.subr.mxu0 0.0
  %2544 = vmatpush1.msra.mxu0 0.0
  %2545 = vmatprep.subr.mxu0 0.0
  %2546 = vmatpush1.msra.mxu0 0.0
  %2547 = vmatprep.subr.mxu0 0.0
  %2548 = vmatpush1.msra.mxu0 0.0
  %2549 = vmatprep.subr.mxu0 0.0
  %2550 = vmatpush1.msra.mxu0 0.0
  %2551 = vmatprep.subr.mxu0 0.0
  %2552 = vmatpush1.msra.mxu0 0.0
  %2553 = vmatprep.subr.mxu0 0.0
  %2554 = vmatpush1.msra.mxu0 0.0
  %2555 = vmatprep.subr.mxu0 0.0
  %2556 = vmatpush1.msra.mxu0 0.0
  %2557 = vmatprep.subr.mxu0 0.0
  %2558 = vmatpush1.msra.mxu0 0.0
  %2559 = vmatprep.subr.mxu0 0.0
  %2560 = vmatpush1.msra.mxu0 0.0
  %2561 = vmatprep.subr.mxu0 0.0
  %2562 = vmatpush1.msra.mxu0 0.0
  %2563 = vmatprep.subr.mxu0 0.0
  %2564 = vmatpush1.msra.mxu0 0.0
  %2565 = vmatprep.subr.mxu0 0.0
  %2566 = vmatpush1.msra.mxu0 0.0
  %2567 = vmatprep.subr.mxu0 0.0
  %2568 = vmatpush1.msra.mxu0 0.0
  %2569 = vmatprep.subr.mxu0 0.0
  %2570 = vmatpush1.msra.mxu0 0.0
  %2571 = vmatprep.subr.mxu0 0.0
  %2572 = vmatpush1.msra.mxu0 0.0
  %2573 = vmatprep.subr.mxu0 0.0
  %2574 = vmatpush1.msra.mxu0 0.0
  %2575 = vmatprep.subr.mxu0 0.0
  %2576 = vmatpush1.msra.mxu0 0.0
  %2577 = vmatprep.subr.mxu0 0.0
  %2578 = vmatpush1.msra.mxu0 0.0
  %2579 = vmatprep.subr.mxu0 0.0
  %2580 = vmatpush1.msra.mxu0 0.0
  %2581 = vmatprep.mubr.f32.mxu0 0.0
  %2582 = vmatmul.mubr.f32.gmra.mrb[0].mxu0 %v2506
  %v2583 = vpop.f32.mrb[0].mxu0
  %v2584 = vadd.f32 0.0, %v2583
  %v2585 = vpop.f32.mrb[0].mxu0
  %2586 = vmatprep.mubr.f32.mxu0 0.0
  %2587 = vmatmul.mubr.f32.gmra.mrb[0].mxu0 %v2509
  %v2588 = vpop.f32.mrb[0].mxu0
  %v2589 = vadd.f32 0.0, %v2588
  %v2590 = vpop.f32.mrb[0].mxu0
  %2591 = vmatprep.mubr.f32.mxu0 0.0
  %2592 = vmatmul.mubr.f32.gmra.mrb[0].mxu0 %v2512
  %v2593 = vpop.f32.mrb[0].mxu0
  %v2594 = vadd.f32 0.0, %v2593
  %v2595 = vpop.f32.mrb[0].mxu0
  %2596 = vmatprep.mubr.f32.mxu0 0.0
  %2597 = vmatmul.mubr.f32.gmra.mrb[0].mxu0 %v2515
  %v2598 = vpop.f32.mrb[0].mxu0
  %v2599 = vadd.f32 0.0, %v2598
  %v2600 = vpop.f32.mrb[0].mxu0
  %2601 = vdwg.mxu0
  %v2603 = vsel %vm1628, %v2484, 0
  %v2606 = vsel %vm1628, %v2487, 0
  %v2609 = vsel %vm1628, %v2490, 0
  %v2612 = vsel %vm1628, %v2493, 0
  %2614 = vmatprep.subr.mxu0 0.0
  %2615 = vmatpush1.msra.mxu0 %v2496
  %2616 = vmatprep.subr.mxu0 0.0
  %2617 = vmatpush1.msra.mxu0 %v2497
  %2618 = vmatprep.subr.mxu0 0.0
  %2619 = vmatpush1.msra.mxu0 %v2498
  %2620 = vmatprep.subr.mxu0 0.0
  %2621 = vmatpush1.msra.mxu0 %v2499
  %2622 = vmatprep.subr.mxu0 0.0
  %2623 = vmatpush1.msra.mxu0 0.0
  %2624 = vmatprep.subr.mxu0 0.0
  %2625 = vmatpush1.msra.mxu0 0.0
  %2626 = vmatprep.subr.mxu0 0.0
  %2627 = vmatpush1.msra.mxu0 0.0
  %2628 = vmatprep.subr.mxu0 0.0
  %2629 = vmatpush1.msra.mxu0 0.0
  %2630 = vmatprep.subr.mxu0 0.0
  %2631 = vmatpush1.msra.mxu0 0.0
  %2632 = vmatprep.subr.mxu0 0.0
  %2633 = vmatpush1.msra.mxu0 0.0
  %2634 = vmatprep.subr.mxu0 0.0
  %2635 = vmatpush1.msra.mxu0 0.0
  %2636 = vmatprep.subr.mxu0 0.0
  %2637 = vmatpush1.msra.mxu0 0.0
  %2638 = vmatprep.subr.mxu0 0.0
  %2639 = vmatpush1.msra.mxu0 0.0
  %2640 = vmatprep.subr.mxu0 0.0
  %2641 = vmatpush1.msra.mxu0 0.0
  %2642 = vmatprep.subr.mxu0 0.0
  %2643 = vmatpush1.msra.mxu0 0.0
  %2644 = vmatprep.subr.mxu0 0.0
  %2645 = vmatpush1.msra.mxu0 0.0
  %2646 = vmatprep.subr.mxu0 0.0
  %2647 = vmatpush1.msra.mxu0 0.0
  %2648 = vmatprep.subr.mxu0 0.0
  %2649 = vmatpush1.msra.mxu0 0.0
  %2650 = vmatprep.subr.mxu0 0.0
  %2651 = vmatpush1.msra.mxu0 0.0
  %2652 = vmatprep.subr.mxu0 0.0
  %2653 = vmatpush1.msra.mxu0 0.0
  %2654 = vmatprep.subr.mxu0 0.0
  %2655 = vmatpush1.msra.mxu0 0.0
  %2656 = vmatprep.subr.mxu0 0.0
  %2657 = vmatpush1.msra.mxu0 0.0
  %2658 = vmatprep.subr.mxu0 0.0
  %2659 = vmatpush1.msra.mxu0 0.0
  %2660 = vmatprep.subr.mxu0 0.0
  %2661 = vmatpush1.msra.mxu0 0.0
  %2662 = vmatprep.subr.mxu0 0.0
  %2663 = vmatpush1.msra.mxu0 0.0
  %2664 = vmatprep.subr.mxu0 0.0
  %2665 = vmatpush1.msra.mxu0 0.0
  %2666 = vmatprep.subr.mxu0 0.0
  %2667 = vmatpush1.msra.mxu0 0.0
  %2668 = vmatprep.subr.mxu0 0.0
  %2669 = vmatpush1.msra.mxu0 0.0
  %2670 = vmatprep.subr.mxu0 0.0
  %2671 = vmatpush1.msra.mxu0 0.0
  %2672 = vmatprep.subr.mxu0 0.0
  %2673 = vmatpush1.msra.mxu0 0.0
  %2674 = vmatprep.subr.mxu0 0.0
  %2675 = vmatpush1.msra.mxu0 0.0
  %2676 = vmatprep.subr.mxu0 0.0
  %2677 = vmatpush1.msra.mxu0 0.0
  %2678 = vmatprep.mubr.f32.mxu0 0.0
  %2679 = vmatmul.mubr.f32.gmra.mrb[0].mxu0 %v2603
  %v2680 = vpop.f32.mrb[0].mxu0
  %v2681 = vadd.f32 %v2584, %v2680
  %v2682 = vpop.f32.mrb[0].mxu0
  %2683 = vmatprep.mubr.f32.mxu0 0.0
  %2684 = vmatmul.mubr.f32.gmra.mrb[0].mxu0 %v2606
  %v2685 = vpop.f32.mrb[0].mxu0
  %v2686 = vadd.f32 %v2589, %v2685
  %v2687 = vpop.f32.mrb[0].mxu0
  %2688 = vmatprep.mubr.f32.mxu0 0.0
  %2689 = vmatmul.mubr.f32.gmra.mrb[0].mxu0 %v2609
  %v2690 = vpop.f32.mrb[0].mxu0
  %v2691 = vadd.f32 %v2594, %v2690
  %v2692 = vpop.f32.mrb[0].mxu0
  %2693 = vmatprep.mubr.f32.mxu0 0.0
  %2694 = vmatmul.mubr.f32.gmra.mrb[0].mxu0 %v2612
  %v2695 = vpop.f32.mrb[0].mxu0
  %v2696 = vadd.f32 %v2599, %v2695
  %v2697 = vpop.f32.mrb[0].mxu0
  %2698 = vdwg.mxu0
  %s2699 = scalar_lea.vmem %s5, 64
  %v2700 = vld [vmem:[%s2699] sm:$0xff]
  %v2701 = vld [vmem:[%s2699 + $0x8] sm:$0xff]
  %v2702 = vld [vmem:[%s2699 + $0x10] sm:$0xff]
  %v2703 = vld [vmem:[%s2699 + $0x18] sm:$0xff]
  %v2705 = vsel %vm1628, %v2486, 0
  %v2708 = vsel %vm1628, %v2489, 0
  %v2711 = vsel %vm1628, %v2492, 0
  %v2714 = vsel %vm1628, %v2495, 0
  %2716 = vmatprep.subr.mxu0 0.0
  %2717 = vmatpush1.msra.mxu0 %v2700
  %2718 = vmatprep.subr.mxu0 0.0
  %2719 = vmatpush1.msra.mxu0 %v2701
  %2720 = vmatprep.subr.mxu0 0.0
  %2721 = vmatpush1.msra.mxu0 %v2702
  %2722 = vmatprep.subr.mxu0 0.0
  %2723 = vmatpush1.msra.mxu0 %v2703
  %2724 = vmatprep.subr.mxu0 0.0
  %2725 = vmatpush1.msra.mxu0 0.0
  %2726 = vmatprep.subr.mxu0 0.0
  %2727 = vmatpush1.msra.mxu0 0.0
  %2728 = vmatprep.subr.mxu0 0.0
  %2729 = vmatpush1.msra.mxu0 0.0
  %2730 = vmatprep.subr.mxu0 0.0
  %2731 = vmatpush1.msra.mxu0 0.0
  %2732 = vmatprep.subr.mxu0 0.0
  %2733 = vmatpush1.msra.mxu0 0.0
  %2734 = vmatprep.subr.mxu0 0.0
  %2735 = vmatpush1.msra.mxu0 0.0
  %2736 = vmatprep.subr.mxu0 0.0
  %2737 = vmatpush1.msra.mxu0 0.0
  %2738 = vmatprep.subr.mxu0 0.0
  %2739 = vmatpush1.msra.mxu0 0.0
  %2740 = vmatprep.subr.mxu0 0.0
  %2741 = vmatpush1.msra.mxu0 0.0
  %2742 = vmatprep.subr.mxu0 0.0
  %2743 = vmatpush1.msra.mxu0 0.0
  %2744 = vmatprep.subr.mxu0 0.0
  %2745 = vmatpush1.msra.mxu0 0.0
  %2746 = vmatprep.subr.mxu0 0.0
  %2747 = vmatpush1.msra.mxu0 0.0
  %2748 = vmatprep.subr.mxu0 0.0
  %2749 = vmatpush1.msra.mxu0 0.0
  %2750 = vmatprep.subr.mxu0 0.0
  %2751 = vmatpush1.msra.mxu0 0.0
  %2752 = vmatprep.subr.mxu0 0.0
  %2753 = vmatpush1.msra.mxu0 0.0
  %2754 = vmatprep.subr.mxu0 0.0
  %2755 = vmatpush1.msra.mxu0 0.0
  %2756 = vmatprep.subr.mxu0 0.0
  %2757 = vmatpush1.msra.mxu0 0.0
  %2758 = vmatprep.subr.mxu0 0.0
  %2759 = vmatpush1.msra.mxu0 0.0
  %2760 = vmatprep.subr.mxu0 0.0
  %2761 = vmatpush1.msra.mxu0 0.0
  %2762 = vmatprep.subr.mxu0 0.0
  %2763 = vmatpush1.msra.mxu0 0.0
  %2764 = vmatprep.subr.mxu0 0.0
  %2765 = vmatpush1.msra.mxu0 0.0
  %2766 = vmatprep.subr.mxu0 0.0
  %2767 = vmatpush1.msra.mxu0 0.0
  %2768 = vmatprep.subr.mxu0 0.0
  %2769 = vmatpush1.msra.mxu0 0.0
  %2770 = vmatprep.subr.mxu0 0.0
  %2771 = vmatpush1.msra.mxu0 0.0
  %2772 = vmatprep.subr.mxu0 0.0
  %2773 = vmatpush1.msra.mxu0 0.0
  %2774 = vmatprep.subr.mxu0 0.0
  %2775 = vmatpush1.msra.mxu0 0.0
  %2776 = vmatprep.subr.mxu0 0.0
  %2777 = vmatpush1.msra.mxu0 0.0
  %2778 = vmatprep.subr.mxu0 0.0
  %2779 = vmatpush1.msra.mxu0 0.0
  %2780 = vmatprep.mubr.f32.mxu0 0.0
  %2781 = vmatmul.mubr.f32.gmra.mrb[0].mxu0 %v2705
  %v2782 = vpop.f32.mrb[0].mxu0
  %v2783 = vadd.f32 0.0, %v2782
  %v2784 = vpop.f32.mrb[0].mxu0
  %2785 = vmatprep.mubr.f32.mxu0 0.0
  %2786 = vmatmul.mubr.f32.gmra.mrb[0].mxu0 %v2708
  %v2787 = vpop.f32.mrb[0].mxu0
  %v2788 = vadd.f32 0.0, %v2787
  %v2789 = vpop.f32.mrb[0].mxu0
  %2790 = vmatprep.mubr.f32.mxu0 0.0
  %2791 = vmatmul.mubr.f32.gmra.mrb[0].mxu0 %v2711
  %v2792 = vpop.f32.mrb[0].mxu0
  %v2793 = vadd.f32 0.0, %v2792
  %v2794 = vpop.f32.mrb[0].mxu0
  %2795 = vmatprep.mubr.f32.mxu0 0.0
  %2796 = vmatmul.mubr.f32.gmra.mrb[0].mxu0 %v2714
  %v2797 = vpop.f32.mrb[0].mxu0
  %v2798 = vadd.f32 0.0, %v2797
  %v2799 = vpop.f32.mrb[0].mxu0
  %2800 = vdwg.mxu0
  %v2801 = vadd.f32 %v2681, %v2783
  %v2802 = vadd.f32 %v2686, %v2788
  %v2803 = vadd.f32 %v2691, %v2793
  %v2804 = vadd.f32 %v2696, %v2798
  %v2805 = vld [vmem:[%s6] sm:$0x1]
  %v2807 = vlaneseq
  %v2808 = vshrl.u32 %v2807, 7
  %v2809 = vsub.s32 0, %v2808
  %v2810 = vrot.slane %v2805, %v2809
  %v2812 = vadd.f32 %v2801, %v2810
  %v2813 = vadd.f32 %v2802, %v2810
  %v2814 = vadd.f32 %v2803, %v2810
  %v2815 = vadd.f32 %v2804, %v2810
  %v2816 = vmax.f32 %v2812, 0.0
  %v2817 = vmax.f32 %v2813, 0.0
  %v2818 = vmax.f32 %v2814, 0.0
  %v2819 = vmax.f32 %v2815, 0.0
  %v2820 = vmax.f32 %v2816, %v2817
  %v2821 = vmax.f32 %v2818, %v2819
  %v2822 = vld [vmem:[%s7] sm:$0xff]
  %v2823 = vld [vmem:[%s7 + $0x8] sm:$0xff]
  %v2824 = vld [vmem:[%s7 + $0x10] sm:$0xff]
  %v2825 = vld [vmem:[%s7 + $0x18] sm:$0xff]
  %s2826 = scalar_lea.vmem %s7, 32
  %v2827 = vld [vmem:[%s2826] sm:$0xff]
  %v2828 = vld [vmem:[%s2826 + $0x8] sm:$0xff]
  %v2829 = vld [vmem:[%s2826 + $0x10] sm:$0xff]
  %v2830 = vld [vmem:[%s2826 + $0x18] sm:$0xff]
  %v2832 = vsel %vm1628, %v2821, 0
  %2834 = vmatprep.subr.mxu0 0.0
  %2835 = vmatpush1.msra.mxu0 %v2827
  %2836 = vmatprep.subr.mxu0 0.0
  %2837 = vmatpush1.msra.mxu0 %v2828
  %2838 = vmatprep.subr.mxu0 0.0
  %2839 = vmatpush1.msra.mxu0 %v2829
  %2840 = vmatprep.subr.mxu0 0.0
  %2841 = vmatpush1.msra.mxu0 %v2830
  %2842 = vmatprep.subr.mxu0 0.0
  %2843 = vmatpush1.msra.mxu0 0.0
  %2844 = vmatprep.subr.mxu0 0.0
  %2845 = vmatpush1.msra.mxu0 0.0
  %2846 = vmatprep.subr.mxu0 0.0
  %2847 = vmatpush1.msra.mxu0 0.0
  %2848 = vmatprep.subr.mxu0 0.0
  %2849 = vmatpush1.msra.mxu0 0.0
  %2850 = vmatprep.subr.mxu0 0.0
  %2851 = vmatpush1.msra.mxu0 0.0
  %2852 = vmatprep.subr.mxu0 0.0
  %2853 = vmatpush1.msra.mxu0 0.0
  %2854 = vmatprep.subr.mxu0 0.0
  %2855 = vmatpush1.msra.mxu0 0.0
  %2856 = vmatprep.subr.mxu0 0.0
  %2857 = vmatpush1.msra.mxu0 0.0
  %2858 = vmatprep.subr.mxu0 0.0
  %2859 = vmatpush1.msra.mxu0 0.0
  %2860 = vmatprep.subr.mxu0 0.0
  %2861 = vmatpush1.msra.mxu0 0.0
  %2862 = vmatprep.subr.mxu0 0.0
  %2863 = vmatpush1.msra.mxu0 0.0
  %2864 = vmatprep.subr.mxu0 0.0
  %2865 = vmatpush1.msra.mxu0 0.0
  %2866 = vmatprep.subr.mxu0 0.0
  %2867 = vmatpush1.msra.mxu0 0.0
  %2868 = vmatprep.subr.mxu0 0.0
  %2869 = vmatpush1.msra.mxu0 0.0
  %2870 = vmatprep.subr.mxu0 0.0
  %2871 = vmatpush1.msra.mxu0 0.0
  %2872 = vmatprep.subr.mxu0 0.0
  %2873 = vmatpush1.msra.mxu0 0.0
  %2874 = vmatprep.subr.mxu0 0.0
  %2875 = vmatpush1.msra.mxu0 0.0
  %2876 = vmatprep.subr.mxu0 0.0
  %2877 = vmatpush1.msra.mxu0 0.0
  %2878 = vmatprep.subr.mxu0 0.0
  %2879 = vmatpush1.msra.mxu0 0.0
  %2880 = vmatprep.subr.mxu0 0.0
  %2881 = vmatpush1.msra.mxu0 0.0
  %2882 = vmatprep.subr.mxu0 0.0
  %2883 = vmatpush1.msra.mxu0 0.0
  %2884 = vmatprep.subr.mxu0 0.0
  %2885 = vmatpush1.msra.mxu0 0.0
  %2886 = vmatprep.subr.mxu0 0.0
  %2887 = vmatpush1.msra.mxu0 0.0
  %2888 = vmatprep.subr.mxu0 0.0
  %2889 = vmatpush1.msra.mxu0 0.0
  %2890 = vmatprep.subr.mxu0 0.0
  %2891 = vmatpush1.msra.mxu0 0.0
  %2892 = vmatprep.subr.mxu0 0.0
  %2893 = vmatpush1.msra.mxu0 0.0
  %2894 = vmatprep.subr.mxu0 0.0
  %2895 = vmatpush1.msra.mxu0 0.0
  %2896 = vmatprep.subr.mxu0 0.0
  %2897 = vmatpush1.msra.mxu0 0.0
  %2898 = vmatprep.mubr.f32.mxu0 0.0
  %2899 = vmatmul.mubr.f32.gmra.mrb[0].mxu0 %v2832
  %v2900 = vpop.f32.mrb[0].mxu0
  %v2901 = vadd.f32 0.0, %v2900
  %v2902 = vpop.f32.mrb[0].mxu0
  %2903 = vdwg.mxu0
  %v2905 = vsel %vm1628, %v2820, 0
  %2907 = vmatprep.subr.mxu0 0.0
  %2908 = vmatpush1.msra.mxu0 %v2822
  %2909 = vmatprep.subr.mxu0 0.0
  %2910 = vmatpush1.msra.mxu0 %v2823
  %2911 = vmatprep.subr.mxu0 0.0
  %2912 = vmatpush1.msra.mxu0 %v2824
  %2913 = vmatprep.subr.mxu0 0.0
  %2914 = vmatpush1.msra.mxu0 %v2825
  %2915 = vmatprep.subr.mxu0 0.0
  %2916 = vmatpush1.msra.mxu0 0.0
  %2917 = vmatprep.subr.mxu0 0.0
  %2918 = vmatpush1.msra.mxu0 0.0
  %2919 = vmatprep.subr.mxu0 0.0
  %2920 = vmatpush1.msra.mxu0 0.0
  %2921 = vmatprep.subr.mxu0 0.0
  %2922 = vmatpush1.msra.mxu0 0.0
  %2923 = vmatprep.subr.mxu0 0.0
  %2924 = vmatpush1.msra.mxu0 0.0
  %2925 = vmatprep.subr.mxu0 0.0
  %2926 = vmatpush1.msra.mxu0 0.0
  %2927 = vmatprep.subr.mxu0 0.0
  %2928 = vmatpush1.msra.mxu0 0.0
  %2929 = vmatprep.subr.mxu0 0.0
  %2930 = vmatpush1.msra.mxu0 0.0
  %2931 = vmatprep.subr.mxu0 0.0
  %2932 = vmatpush1.msra.mxu0 0.0
  %2933 = vmatprep.subr.mxu0 0.0
  %2934 = vmatpush1.msra.mxu0 0.0
  %2935 = vmatprep.subr.mxu0 0.0
  %2936 = vmatpush1.msra.mxu0 0.0
  %2937 = vmatprep.subr.mxu0 0.0
  %2938 = vmatpush1.msra.mxu0 0.0
  %2939 = vmatprep.subr.mxu0 0.0
  %2940 = vmatpush1.msra.mxu0 0.0
  %2941 = vmatprep.subr.mxu0 0.0
  %2942 = vmatpush1.msra.mxu0 0.0
  %2943 = vmatprep.subr.mxu0 0.0
  %2944 = vmatpush1.msra.mxu0 0.0
  %2945 = vmatprep.subr.mxu0 0.0
  %2946 = vmatpush1.msra.mxu0 0.0
  %2947 = vmatprep.subr.mxu0 0.0
  %2948 = vmatpush1.msra.mxu0 0.0
  %2949 = vmatprep.subr.mxu0 0.0
  %2950 = vmatpush1.msra.mxu0 0.0
  %2951 = vmatprep.subr.mxu0 0.0
  %2952 = vmatpush1.msra.mxu0 0.0
  %2953 = vmatprep.subr.mxu0 0.0
  %2954 = vmatpush1.msra.mxu0 0.0
  %2955 = vmatprep.subr.mxu0 0.0
  %2956 = vmatpush1.msra.mxu0 0.0
  %2957 = vmatprep.subr.mxu0 0.0
  %2958 = vmatpush1.msra.mxu0 0.0
  %2959 = vmatprep.subr.mxu0 0.0
  %2960 = vmatpush1.msra.mxu0 0.0
  %2961 = vmatprep.subr.mxu0 0.0
  %2962 = vmatpush1.msra.mxu0 0.0
  %2963 = vmatprep.subr.mxu0 0.0
  %2964 = vmatpush1.msra.mxu0 0.0
  %2965 = vmatprep.subr.mxu0 0.0
  %2966 = vmatpush1.msra.mxu0 0.0
  %2967 = vmatprep.subr.mxu0 0.0
  %2968 = vmatpush1.msra.mxu0 0.0
  %2969 = vmatprep.subr.mxu0 0.0
  %2970 = vmatpush1.msra.mxu0 0.0
  %2971 = vmatprep.mubr.f32.mxu0 0.0
  %2972 = vmatmul.mubr.f32.gmra.mrb[0].mxu0 %v2905
  %v2973 = vpop.f32.mrb[0].mxu0
  %v2974 = vadd.f32 %v2901, %v2973
  %v2975 = vpop.f32.mrb[0].mxu0
  %2976 = vdwg.mxu0
  %v2977 = vld [vmem:[%s8] sm:$0x1]
  %v2979 = vlaneseq
  %v2980 = vshrl.u32 %v2979, 7
  %v2981 = vsub.s32 0, %v2980
  %v2982 = vrot.slane %v2977, %v2981
  %v2984 = vadd.f32 %v2974, %v2982
  %vm2985 = vcmask 15360
  %v2986 = vsel %vm2985, %v2984, -inf
  %2987 = vmax.xlane.f32.xlu0 %v2986
  %v2988 = vpop.xlane.xlu0 %2987
  %v2989 = vsub.f32 %v2984, %v2988
  %v2990 = vmul.f32 %v2989, 1.442695
  %v2991 = vpow.pop %v2990
  %v2992 = vsel %vm2985, %v2991, 0.0
  %2993 = vadd.xlane.f32.xlu0 %v2992
  %v2994 = vpop.xlane.xlu0 %2993
  %v2995 = vrcp.pop %v2994
  %v2996 = vmul.f32 %v2991, %v2995
  %2997 = vst.msk [vmem:[%s9] sm:$0xff] %vm2985, %v2996
  // Predicated region
  $region38: #{apnea_resnet_forward.1} parent=0 // pred_check
    _
  $region39: #{apnea_resnet_forward.1} parent=0 // pred_check_branch
    %2999 = sbr.rel (0) target = $region41
  $region40: #{apnea_resnet_forward.1} parent=0 // pred_region
    _
  $region41: #{apnea_resnet_forward.1} parent=0 // pred_fallthru
    _
  // Predicated region
  $region42: #{apnea_resnet_forward.1} parent=0 // pred_check
    _
  $region43: #{apnea_resnet_forward.1} parent=0 // pred_check_branch
    %3001 = sbr.rel (0) target = $region45
  $region44: #{apnea_resnet_forward.1} parent=0 // pred_region
    _
  $region45: #{apnea_resnet_forward.1} parent=0 // pred_fallthru
    _

</llo_original>
